<compile_context>
chip_gen: v7x
topology: tpu7x:2x2x1
jax: 0.10.0
libtpu: 0.0.40
codegen_flags: <defaults>
</compile_context>

<pallas_src>
import math
import functools

import jax
import jax.numpy as jnp
from jax.experimental import pallas as pl
from jax.experimental.pallas import tpu as pltpu


# ----------------------------------------------------------------------------
# helpers
# ----------------------------------------------------------------------------

def _pick_tile(dim, target):
    """Largest divisor of `dim` that is <= target (falls back to full dim)."""
    t = min(target, dim)
    while dim % t != 0:
        t -= 1
    return t


# ----------------------------------------------------------------------------
# Tiled GEMM (+ bias, optional ReLU) kernel
# ----------------------------------------------------------------------------

def _matmul_kernel(x_ref, w_ref, b_ref, o_ref, acc_ref, *, activation):
    k = pl.program_id(2)

    @pl.when(k == 0)
    def _():
        acc_ref[...] = jnp.zeros_like(acc_ref)

    acc_ref[...] += jnp.dot(x_ref[...], w_ref[...],
                            preferred_element_type=jnp.float32)

    @pl.when(k == pl.num_programs(2) - 1)
    def _():
        y = acc_ref[...] + b_ref[...]          # bias in f32
        if activation == "relu":
            y = jnp.maximum(y, 0.0)
        o_ref[...] = y.astype(o_ref.dtype)


def linear(x, w, b, activation=None, out_dtype=jnp.bfloat16,
           tile_m=256, tile_n=512, tile_k=256):
    """x: (M, K) bf16, w: (K, N) bf16, b: (1, N) f32 -> (M, N) out_dtype."""
    M, K = x.shape
    N = w.shape[1]
    tm = _pick_tile(M, tile_m)
    tn = _pick_tile(N, tile_n)
    tk = _pick_tile(K, tile_k)
    return pl.pallas_call(
        functools.partial(_matmul_kernel, activation=activation),
        out_shape=jax.ShapeDtypeStruct((M, N), out_dtype),
        grid=(M // tm, N // tn, K // tk),
        in_specs=[
            pl.BlockSpec((tm, tk), lambda i, j, k: (i, k)),
            pl.BlockSpec((tk, tn), lambda i, j, k: (k, j)),
            pl.BlockSpec((1, tn), lambda i, j, k: (0, j)),
        ],
        out_specs=pl.BlockSpec((tm, tn), lambda i, j, k: (i, j)),
        scratch_shapes=[pltpu.VMEM((tm, tn), jnp.float32)],
        compiler_params=pltpu.CompilerParams(
            dimension_semantics=("parallel", "parallel", "arbitrary")),
    )(x, w, b)


# ----------------------------------------------------------------------------
# Fused residual-add + LayerNorm kernel
# ----------------------------------------------------------------------------

def _add_layernorm_kernel(a_ref, b_ref, g_ref, beta_ref, o_ref):
    x = a_ref[...].astype(jnp.float32) + b_ref[...].astype(jnp.float32)
    mu = jnp.mean(x, axis=-1, keepdims=True)
    var = jnp.mean(jnp.square(x - mu), axis=-1, keepdims=True)
    y = (x - mu) * jax.lax.rsqrt(var + 1e-5)
    o_ref[...] = (y * g_ref[...] + beta_ref[...]).astype(o_ref.dtype)


def add_layernorm(a, b, g, beta, out_dtype=jnp.bfloat16, tile_m=512):
    """(a + b) -> layernorm.  a, b: (M, D) bf16; g, beta: (1, D) f32."""
    M, D = a.shape
    tm = _pick_tile(M, tile_m)
    row_spec = pl.BlockSpec((tm, D), lambda i: (i, 0))
    vec_spec = pl.BlockSpec((1, D), lambda i: (0, 0))
    return pl.pallas_call(
        _add_layernorm_kernel,
        out_shape=jax.ShapeDtypeStruct((M, D), out_dtype),
        grid=(M // tm,),
        in_specs=[row_spec, row_spec, vec_spec, vec_spec],
        out_specs=row_spec,
        compiler_params=pltpu.CompilerParams(
            dimension_semantics=("parallel",)),
    )(a, b, g, beta)


# ----------------------------------------------------------------------------
# Flash-style causal attention (mask generated in-kernel)
# ----------------------------------------------------------------------------

def _flash_attn_kernel(q_ref, k_ref, v_ref, o_ref, m_sc, l_sc, acc_sc,
                       *, scale, tq, tkv):
    qi = pl.program_id(1)
    ki = pl.program_id(2)

    @pl.when(ki == 0)
    def _():
        m_sc[...] = jnp.full_like(m_sc, -jnp.inf)
        l_sc[...] = jnp.zeros_like(l_sc)
        acc_sc[...] = jnp.zeros_like(acc_sc)

    # Skip KV blocks that are entirely above the causal diagonal.
    @pl.when(qi * tq + (tq - 1) >= ki * tkv)
    def _():
        q = q_ref[0]            # (tq, Dh) bf16
        k = k_ref[0]            # (tkv, Dh) bf16
        v = v_ref[0]            # (tkv, Dh) bf16

        # Contract on Dh directly (no k.T relayout).
        s = jax.lax.dot_general(q, k, (((1,), (1,)), ((), ())),
                                preferred_element_type=jnp.float32) * scale

        # Causal mask from index arithmetic (no (S,S) mask tensor in HBM).
        row = qi * tq + jax.lax.broadcasted_iota(jnp.int32, (tq, tkv), 0)
        col = ki * tkv + jax.lax.broadcasted_iota(jnp.int32, (tq, tkv), 1)
        s = jnp.where(row >= col, s, jnp.float32(-1e30))

        m_prev = m_sc[...]
        m_new = jnp.maximum(m_prev, jnp.max(s, axis=-1, keepdims=True))
        alpha = jnp.exp(m_prev - m_new)
        p = jnp.exp(s - m_new)
        l_sc[...] = alpha * l_sc[...] + jnp.sum(p, axis=-1, keepdims=True)
        acc_sc[...] = alpha * acc_sc[...] + jnp.dot(
            p.astype(v.dtype), v, preferred_element_type=jnp.float32)
        m_sc[...] = m_new

    @pl.when(ki == pl.num_programs(2) - 1)
    def _():
        inv_l = pl.reciprocal(l_sc[...], approx=True)
        o_ref[0] = (acc_sc[...] * inv_l).astype(o_ref.dtype)


def flash_causal_attention(q, k, v, tile_q=256, tile_kv=256):
    """q, k, v: (B*H, S, Dh) bf16 -> (B*H, S, Dh) bf16, causal."""
    BH, S, Dh = q.shape
    tq = _pick_tile(S, tile_q)
    tkv = _pick_tile(S, tile_kv)
    scale = 1.0 / math.sqrt(Dh)
    q_spec = pl.BlockSpec((1, tq, Dh), lambda h, qi, ki: (h, qi, 0))
    kv_spec = pl.BlockSpec((1, tkv, Dh), lambda h, qi, ki: (h, ki, 0))
    return pl.pallas_call(
        functools.partial(_flash_attn_kernel, scale=scale, tq=tq, tkv=tkv),
        out_shape=jax.ShapeDtypeStruct((BH, S, Dh), q.dtype),
        grid=(BH, S // tq, S // tkv),
        in_specs=[q_spec, kv_spec, kv_spec],
        out_specs=q_spec,
        scratch_shapes=[
            pltpu.VMEM((tq, 1), jnp.float32),    # running max
            pltpu.VMEM((tq, 1), jnp.float32),    # running denom
            pltpu.VMEM((tq, Dh), jnp.float32),   # running numerator
        ],
        compiler_params=pltpu.CompilerParams(
            dimension_semantics=("parallel", "parallel", "arbitrary")),
    )(q, k, v)


# ----------------------------------------------------------------------------
# Parameter construction (deterministic, synthetic)
# ----------------------------------------------------------------------------

def sinusoidal_pe(max_len, d):
    pos = jnp.arange(max_len, dtype=jnp.float32)[:, None]
    i = jnp.arange(d // 2, dtype=jnp.float32)[None, :]
    div = jnp.exp(-math.log(10000.0) * (2.0 * i) / d)
    pe = jnp.zeros((max_len, d), dtype=jnp.float32)
    pe = pe.at[:, 0::2].set(jnp.sin(pos * div))
    pe = pe.at[:, 1::2].set(jnp.cos(pos * div))
    return pe


def init_params(key, vocab_size, d, max_len, layers, heads, ff_mult=4):
    def dense(k, shape, scale=0.02):
        return (scale * jax.random.normal(k, shape, dtype=jnp.float32)
                ).astype(jnp.bfloat16)

    keys = jax.random.split(key, 2 + layers)
    params = {
        "emb": (1.0 / math.sqrt(d)) * jax.random.normal(
            keys[0], (vocab_size, d), dtype=jnp.float32),
        "pe": sinusoidal_pe(max_len, d),
        "layers": [],
        "w_out": dense(keys[1], (d, vocab_size)),
        "b_out": jnp.zeros((1, vocab_size), jnp.float32),
    }
    dff = ff_mult * d
    for li in range(layers):
        lk = jax.random.split(keys[2 + li], 4)
        params["layers"].append({
            # Fused Q|K|V projection weights.
            "w_qkv": dense(lk[0], (d, 3 * d)),
            "b_qkv": jnp.zeros((1, 3 * d), jnp.float32),
            "wo": dense(lk[1], (d, d)), "bo": jnp.zeros((1, d), jnp.float32),
            "ln1_g": jnp.ones((1, d), jnp.float32),
            "ln1_b": jnp.zeros((1, d), jnp.float32),
            "w1": dense(lk[2], (d, dff)), "b1": jnp.zeros((1, dff), jnp.float32),
            "w2": dense(lk[3], (dff, d)), "b2": jnp.zeros((1, d), jnp.float32),
            "ln2_g": jnp.ones((1, d), jnp.float32),
            "ln2_b": jnp.zeros((1, d), jnp.float32),
        })
    return params


# ----------------------------------------------------------------------------
# Generator forward (mirrors the PyTorch module)
# ----------------------------------------------------------------------------

def generator_forward(params, x_ids, heads):
    B, S = x_ids.shape
    d = params["emb"].shape[1]
    Dh = d // heads

    # TokenEmbedding: learned token emb * sqrt(d) + sinusoidal positional enc.
    # TODO(synk): TokenEmbedding internals not provided; standard emb+PE assumed.
    h = params["emb"][x_ids] * jnp.float32(math.sqrt(d)) + params["pe"][:S]
    h = h.astype(jnp.bfloat16).reshape(B * S, d)

    # TODO(synk): head split/merge transposes stay in XLA (HBM round trip);
    # at real sizes fold heads into the attention BlockSpec for lane density.
    def split_heads(t):
        return t.reshape(B, S, heads, Dh).transpose(0, 2, 1, 3) \
                .reshape(B * heads, S, Dh)

    def merge_heads(t):
        return t.reshape(B, heads, S, Dh).transpose(0, 2, 1, 3) \
                .reshape(B * S, d)

    for lp in params["layers"]:
        # Fused QKV projection: one GEMM instead of three.
        qkv = linear(h, lp["w_qkv"], lp["b_qkv"])          # (B*S, 3d) bf16
        q, k, v = jnp.split(qkv, 3, axis=-1)
        ao = flash_causal_attention(split_heads(q), split_heads(k),
                                    split_heads(v))        # (B*H, S, Dh)
        ao = linear(merge_heads(ao), lp["wo"], lp["bo"])   # (B*S, d)
        # Post-LN residual 1 (residual add fused into the LN kernel).
        h1 = add_layernorm(h, ao, lp["ln1_g"], lp["ln1_b"])
        ff = linear(h1, lp["w1"], lp["b1"], activation="relu")
        ff = linear(ff, lp["w2"], lp["b2"])
        # Post-LN residual 2.
        h = add_layernorm(h1, ff, lp["ln2_g"], lp["ln2_b"])

    # Final vocab projection in f32.
    logits = linear(h, params["w_out"], params["b_out"], out_dtype=jnp.float32)
    return logits.reshape(B, S, -1)


# ----------------------------------------------------------------------------
# Main
# ----------------------------------------------------------------------------

if __name__ == "__main__":
    vocab_size, embedding_size, max_len, layers, heads = 64, 32, 16, 2, 4
    B, S = 2, 8

    key = jax.random.PRNGKey(0)
    pkey, xkey = jax.random.split(key)
    params = init_params(pkey, vocab_size, embedding_size, max_len, layers, heads)
    x_ids = jax.random.randint(xkey, (B, S), 0, vocab_size, dtype=jnp.int32)

    fwd = jax.jit(functools.partial(generator_forward, heads=heads))
    logits = jax.block_until_ready(fwd(params, x_ids))
    assert logits.shape == (B, S, vocab_size)
    assert bool(jnp.all(jnp.isfinite(logits)))
    print("KERNEL_OK")
</pallas_src>

<mosaic_0001>
module attributes {stable_mosaic.version = 11 : i64} {
  func.func @_matmul_kernel(%arg0: i32, %arg1: i32, %arg2: i32, %arg3: memref<16x32xbf16, #tpu.memory_space<vmem>>, %arg4: memref<32x96xbf16, #tpu.memory_space<vmem>>, %arg5: memref<1x96xf32, #tpu.memory_space<vmem>>, %arg6: memref<16x96xbf16, #tpu.memory_space<vmem>>, %arg7: memref<16x96xf32, #tpu.memory_space<vmem>>) attributes {dimension_semantics = [#tpu.dimension_semantics<parallel>, #tpu.dimension_semantics<parallel>, #tpu.dimension_semantics<arbitrary>], iteration_bounds = array<i64: 1, 1, 1>, scalar_prefetch = 0 : i64, scratch_operands = 1 : i64, tpu.core_type = #tpu.core_type<tc>, window_params = [{transform_indices = @transform_0, window_bounds = array<i64: 16, 32>}, {transform_indices = @transform_1, window_bounds = array<i64: 32, 96>}, {transform_indices = @transform_2, window_bounds = array<i64: 1, 96>}, {transform_indices = @transform_3, window_bounds = array<i64: 16, 96>}]} {
    %c0_i32 = arith.constant 0 : i32
    %0 = arith.cmpi eq, %arg2, %c0_i32 : i32
    %1 = arith.extui %0 : i1 to i32
    %c0_i32_0 = arith.constant 0 : i32
    %2 = arith.cmpi ne, %1, %c0_i32_0 : i32
    scf.if %2 {
      %cst_10 = arith.constant 0.000000e+00 : f32
      %12 = vector.broadcast %cst_10 : f32 to vector<16x96xf32>
      %c0_11 = arith.constant 0 : index
      %c0_12 = arith.constant 0 : index
      %13 = vector.load %arg7[%c0_11, %c0_12] : memref<16x96xf32, #tpu.memory_space<vmem>>, vector<16x96xf32>
      tpu.vector_store %arg7[%c0_11, %c0_12], %12 {strides = array<i32>} : memref<16x96xf32, #tpu.memory_space<vmem>>, vector<16x96xf32>,
    } else {
    }
    %c0 = arith.constant 0 : index
    %c0_1 = arith.constant 0 : index
    %3 = vector.load %arg7[%c0, %c0_1] : memref<16x96xf32, #tpu.memory_space<vmem>>, vector<16x96xf32>
    %c0_2 = arith.constant 0 : index
    %c0_3 = arith.constant 0 : index
    %4 = vector.load %arg3[%c0_2, %c0_3] : memref<16x32xbf16, #tpu.memory_space<vmem>>, vector<16x32xbf16>
    %c0_4 = arith.constant 0 : index
    %c0_5 = arith.constant 0 : index
    %5 = vector.load %arg4[%c0_4, %c0_5] : memref<32x96xbf16, #tpu.memory_space<vmem>>, vector<32x96xbf16>
    %cst = arith.constant dense<0.000000e+00> : vector<16x96xf32>
    %6 = tpu.matmul %4, %5, %cst {dimension_numbers = #tpu.dot_dimension_numbers<[1], [0], [0], [1], [0, 0, 1, 1], [], []>} : vector<16x32xbf16>, vector<32x96xbf16>, vector<16x96xf32> -> vector<16x96xf32>
    %7 = arith.addf %3, %6 : vector<16x96xf32>
    %c0_6 = arith.constant 0 : index
    %c0_7 = arith.constant 0 : index
    %8 = vector.load %arg7[%c0_6, %c0_7] : memref<16x96xf32, #tpu.memory_space<vmem>>, vector<16x96xf32>
    tpu.vector_store %arg7[%c0_6, %c0_7], %7 {strides = array<i32>} : memref<16x96xf32, #tpu.memory_space<vmem>>, vector<16x96xf32>,
    %c0_i32_8 = arith.constant 0 : i32
    %9 = arith.cmpi eq, %arg2, %c0_i32_8 : i32
    %10 = arith.extui %9 : i1 to i32
    %c0_i32_9 = arith.constant 0 : i32
    %11 = arith.cmpi ne, %10, %c0_i32_9 : i32
    scf.if %11 {
      %c0_10 = arith.constant 0 : index
      %c0_11 = arith.constant 0 : index
      %12 = vector.load %arg7[%c0_10, %c0_11] : memref<16x96xf32, #tpu.memory_space<vmem>>, vector<16x96xf32>
      %c0_12 = arith.constant 0 : index
      %c0_13 = arith.constant 0 : index
      %13 = vector.load %arg5[%c0_12, %c0_13] : memref<1x96xf32, #tpu.memory_space<vmem>>, vector<1x96xf32>
      %14 = vector.broadcast %13 : vector<1x96xf32> to vector<16x96xf32>
      %15 = arith.addf %12, %14 : vector<16x96xf32>
      %16 = arith.truncf %15 : vector<16x96xf32> to vector<16x96xbf16>
      %c0_14 = arith.constant 0 : index
      %c0_15 = arith.constant 0 : index
      %17 = vector.load %arg6[%c0_14, %c0_15] : memref<16x96xbf16, #tpu.memory_space<vmem>>, vector<16x96xbf16>
      tpu.vector_store %arg6[%c0_14, %c0_15], %16 {strides = array<i32>} : memref<16x96xbf16, #tpu.memory_space<vmem>>, vector<16x96xbf16>,
    } else {
    }
    return
  }
  func.func @transform_0(%arg0: i32, %arg1: i32, %arg2: i32) -> (i32, i32) {
    %c0_i32 = arith.constant 0 : i32
    return %arg0, %arg2 : i32, i32
  }
  func.func @transform_1(%arg0: i32, %arg1: i32, %arg2: i32) -> (i32, i32) {
    %c0_i32 = arith.constant 0 : i32
    return %arg2, %arg1 : i32, i32
  }
  func.func @transform_2(%arg0: i32, %arg1: i32, %arg2: i32) -> (i32, i32) {
    %c0_i32 = arith.constant 0 : i32
    %c0_i32_0 = arith.constant 0 : i32
    return %c0_i32, %arg1 : i32, i32
  }
  func.func @transform_3(%arg0: i32, %arg1: i32, %arg2: i32) -> (i32, i32) {
    %c0_i32 = arith.constant 0 : i32
    return %arg0, %arg1 : i32, i32
  }
}

module attributes {stable_mosaic.version = 11 : i64} {
  func.func @_matmul_kernel(%arg0: i32, %arg1: i32, %arg2: i32, %arg3: memref<16x32xbf16, #tpu.memory_space<vmem>>, %arg4: memref<32x32xbf16, #tpu.memory_space<vmem>>, %arg5: memref<1x32xf32, #tpu.memory_space<vmem>>, %arg6: memref<16x32xbf16, #tpu.memory_space<vmem>>, %arg7: memref<16x32xf32, #tpu.memory_space<vmem>>) attributes {dimension_semantics = [#tpu.dimension_semantics<parallel>, #tpu.dimension_semantics<parallel>, #tpu.dimension_semantics<arbitrary>], iteration_bounds = array<i64: 1, 1, 1>, scalar_prefetch = 0 : i64, scratch_operands = 1 : i64, tpu.core_type = #tpu.core_type<tc>, window_params = [{transform_indices = @transform_0, window_bounds = array<i64: 16, 32>}, {transform_indices = @transform_1, window_bounds = array<i64: 32, 32>}, {transform_indices = @transform_2, window_bounds = array<i64: 1, 32>}, {transform_indices = @transform_3, window_bounds = array<i64: 16, 32>}]} {
    %c0_i32 = arith.constant 0 : i32
    %0 = arith.cmpi eq, %arg2, %c0_i32 : i32
    %1 = arith.extui %0 : i1 to i32
    %c0_i32_0 = arith.constant 0 : i32
    %2 = arith.cmpi ne, %1, %c0_i32_0 : i32
    scf.if %2 {
      %cst_10 = arith.constant 0.000000e+00 : f32
      %12 = vector.broadcast %cst_10 : f32 to vector<16x32xf32>
      %c0_11 = arith.constant 0 : index
      %c0_12 = arith.constant 0 : index
      %13 = vector.load %arg7[%c0_11, %c0_12] : memref<16x32xf32, #tpu.memory_space<vmem>>, vector<16x32xf32>
      tpu.vector_store %arg7[%c0_11, %c0_12], %12 {strides = array<i32>} : memref<16x32xf32, #tpu.memory_space<vmem>>, vector<16x32xf32>,
    } else {
    }
    %c0 = arith.constant 0 : index
    %c0_1 = arith.constant 0 : index
    %3 = vector.load %arg7[%c0, %c0_1] : memref<16x32xf32, #tpu.memory_space<vmem>>, vector<16x32xf32>
    %c0_2 = arith.constant 0 : index
    %c0_3 = arith.constant 0 : index
    %4 = vector.load %arg3[%c0_2, %c0_3] : memref<16x32xbf16, #tpu.memory_space<vmem>>, vector<16x32xbf16>
    %c0_4 = arith.constant 0 : index
    %c0_5 = arith.constant 0 : index
    %5 = vector.load %arg4[%c0_4, %c0_5] : memref<32x32xbf16, #tpu.memory_space<vmem>>, vector<32x32xbf16>
    %cst = arith.constant dense<0.000000e+00> : vector<16x32xf32>
    %6 = tpu.matmul %4, %5, %cst {dimension_numbers = #tpu.dot_dimension_numbers<[1], [0], [0], [1], [0, 0, 1, 1], [], []>} : vector<16x32xbf16>, vector<32x32xbf16>, vector<16x32xf32> -> vector<16x32xf32>
    %7 = arith.addf %3, %6 : vector<16x32xf32>
    %c0_6 = arith.constant 0 : index
    %c0_7 = arith.constant 0 : index
    %8 = vector.load %arg7[%c0_6, %c0_7] : memref<16x32xf32, #tpu.memory_space<vmem>>, vector<16x32xf32>
    tpu.vector_store %arg7[%c0_6, %c0_7], %7 {strides = array<i32>} : memref<16x32xf32, #tpu.memory_space<vmem>>, vector<16x32xf32>,
    %c0_i32_8 = arith.constant 0 : i32
    %9 = arith.cmpi eq, %arg2, %c0_i32_8 : i32
    %10 = arith.extui %9 : i1 to i32
    %c0_i32_9 = arith.constant 0 : i32
    %11 = arith.cmpi ne, %10, %c0_i32_9 : i32
    scf.if %11 {
      %c0_10 = arith.constant 0 : index
      %c0_11 = arith.constant 0 : index
      %12 = vector.load %arg7[%c0_10, %c0_11] : memref<16x32xf32, #tpu.memory_space<vmem>>, vector<16x32xf32>
      %c0_12 = arith.constant 0 : index
      %c0_13 = arith.constant 0 : index
      %13 = vector.load %arg5[%c0_12, %c0_13] : memref<1x32xf32, #tpu.memory_space<vmem>>, vector<1x32xf32>
      %14 = vector.broadcast %13 : vector<1x32xf32> to vector<16x32xf32>
      %15 = arith.addf %12, %14 : vector<16x32xf32>
      %16 = arith.truncf %15 : vector<16x32xf32> to vector<16x32xbf16>
      %c0_14 = arith.constant 0 : index
      %c0_15 = arith.constant 0 : index
      %17 = vector.load %arg6[%c0_14, %c0_15] : memref<16x32xbf16, #tpu.memory_space<vmem>>, vector<16x32xbf16>
      tpu.vector_store %arg6[%c0_14, %c0_15], %16 {strides = array<i32>} : memref<16x32xbf16, #tpu.memory_space<vmem>>, vector<16x32xbf16>,
    } else {
    }
    return
  }
  func.func @transform_0(%arg0: i32, %arg1: i32, %arg2: i32) -> (i32, i32) {
    %c0_i32 = arith.constant 0 : i32
    return %arg0, %arg2 : i32, i32
  }
  func.func @transform_1(%arg0: i32, %arg1: i32, %arg2: i32) -> (i32, i32) {
    %c0_i32 = arith.constant 0 : i32
    return %arg2, %arg1 : i32, i32
  }
  func.func @transform_2(%arg0: i32, %arg1: i32, %arg2: i32) -> (i32, i32) {
    %c0_i32 = arith.constant 0 : i32
    %c0_i32_0 = arith.constant 0 : i32
    return %c0_i32, %arg1 : i32, i32
  }
  func.func @transform_3(%arg0: i32, %arg1: i32, %arg2: i32) -> (i32, i32) {
    %c0_i32 = arith.constant 0 : i32
    return %arg0, %arg1 : i32, i32
  }
}

module attributes {stable_mosaic.version = 11 : i64} {
  func.func @_add_layernorm_kernel(%arg0: i32, %arg1: memref<16x32xbf16, #tpu.memory_space<vmem>>, %arg2: memref<16x32xbf16, #tpu.memory_space<vmem>>, %arg3: memref<1x32xf32, #tpu.memory_space<vmem>>, %arg4: memref<1x32xf32, #tpu.memory_space<vmem>>, %arg5: memref<16x32xbf16, #tpu.memory_space<vmem>>) attributes {dimension_semantics = [#tpu.dimension_semantics<parallel>], iteration_bounds = array<i64: 1>, scalar_prefetch = 0 : i64, scratch_operands = 0 : i64, tpu.core_type = #tpu.core_type<tc>, window_params = [{transform_indices = @transform_0, window_bounds = array<i64: 16, 32>}, {transform_indices = @transform_1, window_bounds = array<i64: 16, 32>}, {pipeline_mode = #tpu.pipeline_mode<synchronous>, transform_indices = @transform_2, window_bounds = array<i64: 1, 32>}, {pipeline_mode = #tpu.pipeline_mode<synchronous>, transform_indices = @transform_3, window_bounds = array<i64: 1, 32>}, {transform_indices = @transform_4, window_bounds = array<i64: 16, 32>}]} {
    %c0 = arith.constant 0 : index
    %c0_0 = arith.constant 0 : index
    %0 = vector.load %arg1[%c0, %c0_0] : memref<16x32xbf16, #tpu.memory_space<vmem>>, vector<16x32xbf16>
    %1 = arith.extf %0 : vector<16x32xbf16> to vector<16x32xf32>
    %c0_1 = arith.constant 0 : index
    %c0_2 = arith.constant 0 : index
    %2 = vector.load %arg2[%c0_1, %c0_2] : memref<16x32xbf16, #tpu.memory_space<vmem>>, vector<16x32xbf16>
    %3 = arith.extf %2 : vector<16x32xbf16> to vector<16x32xf32>
    %4 = arith.addf %1, %3 : vector<16x32xf32>
    %cst = arith.constant dense<0.000000e+00> : vector<16xf32>
    %5 = vector.multi_reduction <add>, %4, %cst [1] : vector<16x32xf32> to vector<16xf32>
    %6 = vector.shape_cast %5 : vector<16xf32> to vector<16x1xf32>
    %cst_3 = arith.constant 3.200000e+01 : f32
    %7 = vector.broadcast %cst_3 : f32 to vector<16x1xf32>
    %8 = arith.divf %6, %7 : vector<16x1xf32>
    %9 = vector.broadcast %8 : vector<16x1xf32> to vector<16x32xf32>
    %10 = arith.subf %4, %9 : vector<16x32xf32>
    %11 = arith.mulf %10, %10 : vector<16x32xf32>
    %cst_4 = arith.constant dense<0.000000e+00> : vector<16xf32>
    %12 = vector.multi_reduction <add>, %11, %cst_4 [1] : vector<16x32xf32> to vector<16xf32>
    %13 = vector.shape_cast %12 : vector<16xf32> to vector<16x1xf32>
    %cst_5 = arith.constant 3.200000e+01 : f32
    %14 = vector.broadcast %cst_5 : f32 to vector<16x1xf32>
    %15 = arith.divf %13, %14 : vector<16x1xf32>
    %16 = vector.broadcast %8 : vector<16x1xf32> to vector<16x32xf32>
    %17 = arith.subf %4, %16 : vector<16x32xf32>
    %cst_6 = arith.constant 9.99999974E-6 : f32
    %18 = vector.broadcast %cst_6 : f32 to vector<16x1xf32>
    %19 = arith.addf %15, %18 : vector<16x1xf32>
    %20 = math.rsqrt %19 : vector<16x1xf32>
    %21 = vector.broadcast %20 : vector<16x1xf32> to vector<16x32xf32>
    %22 = arith.mulf %17, %21 : vector<16x32xf32>
    %c0_7 = arith.constant 0 : index
    %c0_8 = arith.constant 0 : index
    %23 = vector.load %arg3[%c0_7, %c0_8] : memref<1x32xf32, #tpu.memory_space<vmem>>, vector<1x32xf32>
    %24 = vector.broadcast %23 : vector<1x32xf32> to vector<16x32xf32>
    %25 = arith.mulf %22, %24 : vector<16x32xf32>
    %c0_9 = arith.constant 0 : index
    %c0_10 = arith.constant 0 : index
    %26 = vector.load %arg4[%c0_9, %c0_10] : memref<1x32xf32, #tpu.memory_space<vmem>>, vector<1x32xf32>
    %27 = vector.broadcast %26 : vector<1x32xf32> to vector<16x32xf32>
    %28 = arith.addf %25, %27 : vector<16x32xf32>
    %29 = arith.truncf %28 : vector<16x32xf32> to vector<16x32xbf16>
    %c0_11 = arith.constant 0 : index
    %c0_12 = arith.constant 0 : index
    %30 = vector.load %arg5[%c0_11, %c0_12] : memref<16x32xbf16, #tpu.memory_space<vmem>>, vector<16x32xbf16>
    tpu.vector_store %arg5[%c0_11, %c0_12], %29 {strides = array<i32>} : memref<16x32xbf16, #tpu.memory_space<vmem>>, vector<16x32xbf16>,
    return
  }
  func.func @transform_0(%arg0: i32) -> (i32, i32) {
    %c0_i32 = arith.constant 0 : i32
    %c0_i32_0 = arith.constant 0 : i32
    return %arg0, %c0_i32 : i32, i32
  }
  func.func @transform_1(%arg0: i32) -> (i32, i32) {
    %c0_i32 = arith.constant 0 : i32
    %c0_i32_0 = arith.constant 0 : i32
    return %arg0, %c0_i32 : i32, i32
  }
  func.func @transform_2(%arg0: i32) -> (i32, i32) {
    %c0_i32 = arith.constant 0 : i32
    %c0_i32_0 = arith.constant 0 : i32
    %c0_i32_1 = arith.constant 0 : i32
    return %c0_i32, %c0_i32_0 : i32, i32
  }
  func.func @transform_3(%arg0: i32) -> (i32, i32) {
    %c0_i32 = arith.constant 0 : i32
    %c0_i32_0 = arith.constant 0 : i32
    %c0_i32_1 = arith.constant 0 : i32
    return %c0_i32, %c0_i32_0 : i32, i32
  }
  func.func @transform_4(%arg0: i32) -> (i32, i32) {
    %c0_i32 = arith.constant 0 : i32
    %c0_i32_0 = arith.constant 0 : i32
    return %arg0, %c0_i32 : i32, i32
  }
}

module attributes {stable_mosaic.version = 11 : i64} {
  func.func @_flash_attn_kernel(%arg0: i32, %arg1: i32, %arg2: i32, %arg3: memref<1x8x8xbf16, #tpu.memory_space<vmem>>, %arg4: memref<1x8x8xbf16, #tpu.memory_space<vmem>>, %arg5: memref<1x8x8xbf16, #tpu.memory_space<vmem>>, %arg6: memref<1x8x8xbf16, #tpu.memory_space<vmem>>, %arg7: memref<8x1xf32, #tpu.memory_space<vmem>>, %arg8: memref<8x1xf32, #tpu.memory_space<vmem>>, %arg9: memref<8x8xf32, #tpu.memory_space<vmem>>) attributes {dimension_semantics = [#tpu.dimension_semantics<parallel>, #tpu.dimension_semantics<parallel>, #tpu.dimension_semantics<arbitrary>], iteration_bounds = array<i64: 8, 1, 1>, scalar_prefetch = 0 : i64, scratch_operands = 3 : i64, tpu.core_type = #tpu.core_type<tc>, window_params = [{transform_indices = @transform_0, window_bounds = array<i64: 1, 8, 8>}, {transform_indices = @transform_1, window_bounds = array<i64: 1, 8, 8>}, {transform_indices = @transform_2, window_bounds = array<i64: 1, 8, 8>}, {transform_indices = @transform_3, window_bounds = array<i64: 1, 8, 8>}]} {
    %c0_i32 = arith.constant 0 : i32
    %0 = arith.cmpi eq, %arg2, %c0_i32 : i32
    %1 = arith.extui %0 : i1 to i32
    %c0_i32_0 = arith.constant 0 : i32
    %2 = arith.cmpi ne, %1, %c0_i32_0 : i32
    scf.if %2 {
      %cst = arith.constant 0xFF800000 : f32
      %12 = vector.broadcast %cst : f32 to vector<8x1xf32>
      %c0 = arith.constant 0 : index
      %c0_5 = arith.constant 0 : index
      %13 = vector.load %arg7[%c0, %c0_5] : memref<8x1xf32, #tpu.memory_space<vmem>>, vector<8x1xf32>
      tpu.vector_store %arg7[%c0, %c0_5], %12 {strides = array<i32>} : memref<8x1xf32, #tpu.memory_space<vmem>>, vector<8x1xf32>,
      %cst_6 = arith.constant 0.000000e+00 : f32
      %14 = vector.broadcast %cst_6 : f32 to vector<8x1xf32>
      %c0_7 = arith.constant 0 : index
      %c0_8 = arith.constant 0 : index
      %15 = vector.load %arg8[%c0_7, %c0_8] : memref<8x1xf32, #tpu.memory_space<vmem>>, vector<8x1xf32>
      tpu.vector_store %arg8[%c0_7, %c0_8], %14 {strides = array<i32>} : memref<8x1xf32, #tpu.memory_space<vmem>>, vector<8x1xf32>,
      %cst_9 = arith.constant 0.000000e+00 : f32
      %16 = vector.broadcast %cst_9 : f32 to vector<8x8xf32>
      %c0_10 = arith.constant 0 : index
      %c0_11 = arith.constant 0 : index
      %17 = vector.load %arg9[%c0_10, %c0_11] : memref<8x8xf32, #tpu.memory_space<vmem>>, vector<8x8xf32>
      tpu.vector_store %arg9[%c0_10, %c0_11], %16 {strides = array<i32>} : memref<8x8xf32, #tpu.memory_space<vmem>>, vector<8x8xf32>,
    } else {
    }
    %c8_i32 = arith.constant 8 : i32
    %3 = arith.muli %arg1, %c8_i32 : i32
    %c7_i32 = arith.constant 7 : i32
    %4 = arith.addi %3, %c7_i32 : i32
    %c8_i32_1 = arith.constant 8 : i32
    %5 = arith.muli %arg2, %c8_i32_1 : i32
    %6 = arith.cmpi sge, %4, %5 : i32
    %7 = arith.extui %6 : i1 to i32
    %c0_i32_2 = arith.constant 0 : i32
    %8 = arith.cmpi ne, %7, %c0_i32_2 : i32
    scf.if %8 {
      %c0 = arith.constant 0 : index
      %c0_5 = arith.constant 0 : index
      %c0_6 = arith.constant 0 : index
      %12 = vector.load %arg3[%c0, %c0_5, %c0_6] : memref<1x8x8xbf16, #tpu.memory_space<vmem>>, vector<1x8x8xbf16>
      %13 = vector.shape_cast %12 : vector<1x8x8xbf16> to vector<8x8xbf16>
      %c0_7 = arith.constant 0 : index
      %c0_8 = arith.constant 0 : index
      %c0_9 = arith.constant 0 : index
      %14 = vector.load %arg4[%c0_7, %c0_8, %c0_9] : memref<1x8x8xbf16, #tpu.memory_space<vmem>>, vector<1x8x8xbf16>
      %15 = vector.shape_cast %14 : vector<1x8x8xbf16> to vector<8x8xbf16>
      %c0_10 = arith.constant 0 : index
      %c0_11 = arith.constant 0 : index
      %c0_12 = arith.constant 0 : index
      %16 = vector.load %arg5[%c0_10, %c0_11, %c0_12] : memref<1x8x8xbf16, #tpu.memory_space<vmem>>, vector<1x8x8xbf16>
      %17 = vector.shape_cast %16 : vector<1x8x8xbf16> to vector<8x8xbf16>
      %cst = arith.constant dense<0.000000e+00> : vector<8x8xf32>
      %18 = tpu.matmul %13, %15, %cst {dimension_numbers = #tpu.dot_dimension_numbers<[1], [1], [0], [0], [0, 0, 1, 0], [], []>} : vector<8x8xbf16>, vector<8x8xbf16>, vector<8x8xf32> -> vector<8x8xf32>
      %cst_13 = arith.constant 0.353553385 : f32
      %19 = vector.broadcast %cst_13 : f32 to vector<8x8xf32>
      %20 = arith.mulf %18, %19 : vector<8x8xf32>
      %c8_i32_14 = arith.constant 8 : i32
      %21 = arith.muli %arg1, %c8_i32_14 : i32
      %22 = tpu.iota {dimensions = array<i32: 0>} : vector<8x8xi32>
      %23 = vector.broadcast %21 : i32 to vector<8x8xi32>
      %24 = arith.addi %23, %22 : vector<8x8xi32>
      %c8_i32_15 = arith.constant 8 : i32
      %25 = arith.muli %arg2, %c8_i32_15 : i32
      %26 = tpu.iota {dimensions = array<i32: 1>} : vector<8x8xi32>
      %27 = vector.broadcast %25 : i32 to vector<8x8xi32>
      %28 = arith.addi %27, %26 : vector<8x8xi32>
      %29 = arith.cmpi sge, %24, %28 : vector<8x8xi32>
      %cst_16 = arith.constant -1.000000e+30 : f32
      %30 = vector.broadcast %cst_16 : f32 to vector<8x8xf32>
      %31 = arith.select %29, %20, %30 : vector<8x8xi1>, vector<8x8xf32>
      %c0_17 = arith.constant 0 : index
      %c0_18 = arith.constant 0 : index
      %32 = vector.load %arg7[%c0_17, %c0_18] : memref<8x1xf32, #tpu.memory_space<vmem>>, vector<8x1xf32>
      %cst_19 = arith.constant dense<0xFF800000> : vector<8xf32>
      %33 = vector.multi_reduction <maximumf>, %31, %cst_19 [1] : vector<8x8xf32> to vector<8xf32>
      %34 = vector.shape_cast %33 : vector<8xf32> to vector<8x1xf32>
      %35 = arith.maximumf %32, %34 : vector<8x1xf32>
      %36 = arith.subf %32, %35 : vector<8x1xf32>
      %37 = math.exp %36 : vector<8x1xf32>
      %38 = vector.broadcast %35 : vector<8x1xf32> to vector<8x8xf32>
      %39 = arith.subf %31, %38 : vector<8x8xf32>
      %40 = math.exp %39 : vector<8x8xf32>
      %c0_20 = arith.constant 0 : index
      %c0_21 = arith.constant 0 : index
      %41 = vector.load %arg8[%c0_20, %c0_21] : memref<8x1xf32, #tpu.memory_space<vmem>>, vector<8x1xf32>
      %42 = arith.mulf %37, %41 : vector<8x1xf32>
      %cst_22 = arith.constant dense<0.000000e+00> : vector<8xf32>
      %43 = vector.multi_reduction <add>, %40, %cst_22 [1] : vector<8x8xf32> to vector<8xf32>
      %44 = vector.shape_cast %43 : vector<8xf32> to vector<8x1xf32>
      %45 = arith.addf %42, %44 : vector<8x1xf32>
      %c0_23 = arith.constant 0 : index
      %c0_24 = arith.constant 0 : index
      %46 = vector.load %arg8[%c0_23, %c0_24] : memref<8x1xf32, #tpu.memory_space<vmem>>, vector<8x1xf32>
      tpu.vector_store %arg8[%c0_23, %c0_24], %45 {strides = array<i32>} : memref<8x1xf32, #tpu.memory_space<vmem>>, vector<8x1xf32>,
      %c0_25 = arith.constant 0 : index
      %c0_26 = arith.constant 0 : index
      %47 = vector.load %arg9[%c0_25, %c0_26] : memref<8x8xf32, #tpu.memory_space<vmem>>, vector<8x8xf32>
      %48 = vector.broadcast %37 : vector<8x1xf32> to vector<8x8xf32>
      %49 = arith.mulf %48, %47 : vector<8x8xf32>
      %50 = arith.truncf %40 : vector<8x8xf32> to vector<8x8xbf16>
      %cst_27 = arith.constant dense<0.000000e+00> : vector<8x8xf32>
      %51 = tpu.matmul %50, %17, %cst_27 {dimension_numbers = #tpu.dot_dimension_numbers<[1], [0], [0], [1], [0, 0, 1, 1], [], []>} : vector<8x8xbf16>, vector<8x8xbf16>, vector<8x8xf32> -> vector<8x8xf32>
      %52 = arith.addf %49, %51 : vector<8x8xf32>
      %c0_28 = arith.constant 0 : index
      %c0_29 = arith.constant 0 : index
      %53 = vector.load %arg9[%c0_28, %c0_29] : memref<8x8xf32, #tpu.memory_space<vmem>>, vector<8x8xf32>
      tpu.vector_store %arg9[%c0_28, %c0_29], %52 {strides = array<i32>} : memref<8x8xf32, #tpu.memory_space<vmem>>, vector<8x8xf32>,
      %c0_30 = arith.constant 0 : index
      %c0_31 = arith.constant 0 : index
      %54 = vector.load %arg7[%c0_30, %c0_31] : memref<8x1xf32, #tpu.memory_space<vmem>>, vector<8x1xf32>
      tpu.vector_store %arg7[%c0_30, %c0_31], %35 {strides = array<i32>} : memref<8x1xf32, #tpu.memory_space<vmem>>, vector<8x1xf32>,
    } else {
    }
    %c0_i32_3 = arith.constant 0 : i32
    %9 = arith.cmpi eq, %arg2, %c0_i32_3 : i32
    %10 = arith.extui %9 : i1 to i32
    %c0_i32_4 = arith.constant 0 : i32
    %11 = arith.cmpi ne, %10, %c0_i32_4 : i32
    scf.if %11 {
      %c0 = arith.constant 0 : index
      %c0_5 = arith.constant 0 : index
      %12 = vector.load %arg8[%c0, %c0_5] : memref<8x1xf32, #tpu.memory_space<vmem>>, vector<8x1xf32>
      %13 = tpu.reciprocal %12 {approx = true} : vector<8x1xf32> -> vector<8x1xf32>
      %c0_6 = arith.constant 0 : index
      %c0_7 = arith.constant 0 : index
      %14 = vector.load %arg9[%c0_6, %c0_7] : memref<8x8xf32, #tpu.memory_space<vmem>>, vector<8x8xf32>
      %15 = vector.broadcast %13 : vector<8x1xf32> to vector<8x8xf32>
      %16 = arith.mulf %14, %15 : vector<8x8xf32>
      %17 = arith.truncf %16 : vector<8x8xf32> to vector<8x8xbf16>
      %c0_8 = arith.constant 0 : index
      %c0_9 = arith.constant 0 : index
      %c0_10 = arith.constant 0 : index
      %18 = vector.load %arg6[%c0_8, %c0_9, %c0_10] : memref<1x8x8xbf16, #tpu.memory_space<vmem>>, vector<1x8x8xbf16>
      %19 = vector.shape_cast %18 : vector<1x8x8xbf16> to vector<8x8xbf16>
      %20 = vector.shape_cast %17 : vector<8x8xbf16> to vector<1x8x8xbf16>
      tpu.vector_store %arg6[%c0_8, %c0_9, %c0_10], %20 {strides = array<i32>} : memref<1x8x8xbf16, #tpu.memory_space<vmem>>, vector<1x8x8xbf16>,
    } else {
    }
    return
  }
  func.func @transform_0(%arg0: i32, %arg1: i32, %arg2: i32) -> (i32, i32, i32) {
    %c0_i32 = arith.constant 0 : i32
    %c0_i32_0 = arith.constant 0 : i32
    return %arg0, %arg1, %c0_i32 : i32, i32, i32
  }
  func.func @transform_1(%arg0: i32, %arg1: i32, %arg2: i32) -> (i32, i32, i32) {
    %c0_i32 = arith.constant 0 : i32
    %c0_i32_0 = arith.constant 0 : i32
    return %arg0, %arg2, %c0_i32 : i32, i32, i32
  }
  func.func @transform_2(%arg0: i32, %arg1: i32, %arg2: i32) -> (i32, i32, i32) {
    %c0_i32 = arith.constant 0 : i32
    %c0_i32_0 = arith.constant 0 : i32
    return %arg0, %arg2, %c0_i32 : i32, i32, i32
  }
  func.func @transform_3(%arg0: i32, %arg1: i32, %arg2: i32) -> (i32, i32, i32) {
    %c0_i32 = arith.constant 0 : i32
    %c0_i32_0 = arith.constant 0 : i32
    return %arg0, %arg1, %c0_i32 : i32, i32, i32
  }
}

module attributes {stable_mosaic.version = 11 : i64} {
  func.func @_matmul_kernel(%arg0: i32, %arg1: i32, %arg2: i32, %arg3: memref<16x32xbf16, #tpu.memory_space<vmem>>, %arg4: memref<32x64xbf16, #tpu.memory_space<vmem>>, %arg5: memref<1x64xf32, #tpu.memory_space<vmem>>, %arg6: memref<16x64xf32, #tpu.memory_space<vmem>>, %arg7: memref<16x64xf32, #tpu.memory_space<vmem>>) attributes {dimension_semantics = [#tpu.dimension_semantics<parallel>, #tpu.dimension_semantics<parallel>, #tpu.dimension_semantics<arbitrary>], iteration_bounds = array<i64: 1, 1, 1>, scalar_prefetch = 0 : i64, scratch_operands = 1 : i64, tpu.core_type = #tpu.core_type<tc>, window_params = [{transform_indices = @transform_0, window_bounds = array<i64: 16, 32>}, {transform_indices = @transform_1, window_bounds = array<i64: 32, 64>}, {transform_indices = @transform_2, window_bounds = array<i64: 1, 64>}, {transform_indices = @transform_3, window_bounds = array<i64: 16, 64>}]} {
    %c0_i32 = arith.constant 0 : i32
    %0 = arith.cmpi eq, %arg2, %c0_i32 : i32
    %1 = arith.extui %0 : i1 to i32
    %c0_i32_0 = arith.constant 0 : i32
    %2 = arith.cmpi ne, %1, %c0_i32_0 : i32
    scf.if %2 {
      %cst_10 = arith.constant 0.000000e+00 : f32
      %12 = vector.broadcast %cst_10 : f32 to vector<16x64xf32>
      %c0_11 = arith.constant 0 : index
      %c0_12 = arith.constant 0 : index
      %13 = vector.load %arg7[%c0_11, %c0_12] : memref<16x64xf32, #tpu.memory_space<vmem>>, vector<16x64xf32>
      tpu.vector_store %arg7[%c0_11, %c0_12], %12 {strides = array<i32>} : memref<16x64xf32, #tpu.memory_space<vmem>>, vector<16x64xf32>,
    } else {
    }
    %c0 = arith.constant 0 : index
    %c0_1 = arith.constant 0 : index
    %3 = vector.load %arg7[%c0, %c0_1] : memref<16x64xf32, #tpu.memory_space<vmem>>, vector<16x64xf32>
    %c0_2 = arith.constant 0 : index
    %c0_3 = arith.constant 0 : index
    %4 = vector.load %arg3[%c0_2, %c0_3] : memref<16x32xbf16, #tpu.memory_space<vmem>>, vector<16x32xbf16>
    %c0_4 = arith.constant 0 : index
    %c0_5 = arith.constant 0 : index
    %5 = vector.load %arg4[%c0_4, %c0_5] : memref<32x64xbf16, #tpu.memory_space<vmem>>, vector<32x64xbf16>
    %cst = arith.constant dense<0.000000e+00> : vector<16x64xf32>
    %6 = tpu.matmul %4, %5, %cst {dimension_numbers = #tpu.dot_dimension_numbers<[1], [0], [0], [1], [0, 0, 1, 1], [], []>} : vector<16x32xbf16>, vector<32x64xbf16>, vector<16x64xf32> -> vector<16x64xf32>
    %7 = arith.addf %3, %6 : vector<16x64xf32>
    %c0_6 = arith.constant 0 : index
    %c0_7 = arith.constant 0 : index
    %8 = vector.load %arg7[%c0_6, %c0_7] : memref<16x64xf32, #tpu.memory_space<vmem>>, vector<16x64xf32>
    tpu.vector_store %arg7[%c0_6, %c0_7], %7 {strides = array<i32>} : memref<16x64xf32, #tpu.memory_space<vmem>>, vector<16x64xf32>,
    %c0_i32_8 = arith.constant 0 : i32
    %9 = arith.cmpi eq, %arg2, %c0_i32_8 : i32
    %10 = arith.extui %9 : i1 to i32
    %c0_i32_9 = arith.constant 0 : i32
    %11 = arith.cmpi ne, %10, %c0_i32_9 : i32
    scf.if %11 {
      %c0_10 = arith.constant 0 : index
      %c0_11 = arith.constant 0 : index
      %12 = vector.load %arg7[%c0_10, %c0_11] : memref<16x64xf32, #tpu.memory_space<vmem>>, vector<16x64xf32>
      %c0_12 = arith.constant 0 : index
      %c0_13 = arith.constant 0 : index
      %13 = vector.load %arg5[%c0_12, %c0_13] : memref<1x64xf32, #tpu.memory_space<vmem>>, vector<1x64xf32>
      %14 = vector.broadcast %13 : vector<1x64xf32> to vector<16x64xf32>
      %15 = arith.addf %12, %14 : vector<16x64xf32>
      %c0_14 = arith.constant 0 : index
      %c0_15 = arith.constant 0 : index
      %16 = vector.load %arg6[%c0_14, %c0_15] : memref<16x64xf32, #tpu.memory_space<vmem>>, vector<16x64xf32>
      tpu.vector_store %arg6[%c0_14, %c0_15], %15 {strides = array<i32>} : memref<16x64xf32, #tpu.memory_space<vmem>>, vector<16x64xf32>,
    } else {
    }
    return
  }
  func.func @transform_0(%arg0: i32, %arg1: i32, %arg2: i32) -> (i32, i32) {
    %c0_i32 = arith.constant 0 : i32
    return %arg0, %arg2 : i32, i32
  }
  func.func @transform_1(%arg0: i32, %arg1: i32, %arg2: i32) -> (i32, i32) {
    %c0_i32 = arith.constant 0 : i32
    return %arg2, %arg1 : i32, i32
  }
  func.func @transform_2(%arg0: i32, %arg1: i32, %arg2: i32) -> (i32, i32) {
    %c0_i32 = arith.constant 0 : i32
    %c0_i32_0 = arith.constant 0 : i32
    return %c0_i32, %arg1 : i32, i32
  }
  func.func @transform_3(%arg0: i32, %arg1: i32, %arg2: i32) -> (i32, i32) {
    %c0_i32 = arith.constant 0 : i32
    return %arg0, %arg1 : i32, i32
  }
}

module attributes {stable_mosaic.version = 11 : i64} {
  func.func @_matmul_kernel(%arg0: i32, %arg1: i32, %arg2: i32, %arg3: memref<16x128xbf16, #tpu.memory_space<vmem>>, %arg4: memref<128x32xbf16, #tpu.memory_space<vmem>>, %arg5: memref<1x32xf32, #tpu.memory_space<vmem>>, %arg6: memref<16x32xbf16, #tpu.memory_space<vmem>>, %arg7: memref<16x32xf32, #tpu.memory_space<vmem>>) attributes {dimension_semantics = [#tpu.dimension_semantics<parallel>, #tpu.dimension_semantics<parallel>, #tpu.dimension_semantics<arbitrary>], iteration_bounds = array<i64: 1, 1, 1>, scalar_prefetch = 0 : i64, scratch_operands = 1 : i64, tpu.core_type = #tpu.core_type<tc>, window_params = [{transform_indices = @transform_0, window_bounds = array<i64: 16, 128>}, {transform_indices = @transform_1, window_bounds = array<i64: 128, 32>}, {transform_indices = @transform_2, window_bounds = array<i64: 1, 32>}, {transform_indices = @transform_3, window_bounds = array<i64: 16, 32>}]} {
    %c0_i32 = arith.constant 0 : i32
    %0 = arith.cmpi eq, %arg2, %c0_i32 : i32
    %1 = arith.extui %0 : i1 to i32
    %c0_i32_0 = arith.constant 0 : i32
    %2 = arith.cmpi ne, %1, %c0_i32_0 : i32
    scf.if %2 {
      %cst_10 = arith.constant 0.000000e+00 : f32
      %12 = vector.broadcast %cst_10 : f32 to vector<16x32xf32>
      %c0_11 = arith.constant 0 : index
      %c0_12 = arith.constant 0 : index
      %13 = vector.load %arg7[%c0_11, %c0_12] : memref<16x32xf32, #tpu.memory_space<vmem>>, vector<16x32xf32>
      tpu.vector_store %arg7[%c0_11, %c0_12], %12 {strides = array<i32>} : memref<16x32xf32, #tpu.memory_space<vmem>>, vector<16x32xf32>,
    } else {
    }
    %c0 = arith.constant 0 : index
    %c0_1 = arith.constant 0 : index
    %3 = vector.load %arg7[%c0, %c0_1] : memref<16x32xf32, #tpu.memory_space<vmem>>, vector<16x32xf32>
    %c0_2 = arith.constant 0 : index
    %c0_3 = arith.constant 0 : index
    %4 = vector.load %arg3[%c0_2, %c0_3] : memref<16x128xbf16, #tpu.memory_space<vmem>>, vector<16x128xbf16>
    %c0_4 = arith.constant 0 : index
    %c0_5 = arith.constant 0 : index
    %5 = vector.load %arg4[%c0_4, %c0_5] : memref<128x32xbf16, #tpu.memory_space<vmem>>, vector<128x32xbf16>
    %cst = arith.constant dense<0.000000e+00> : vector<16x32xf32>
    %6 = tpu.matmul %4, %5, %cst {dimension_numbers = #tpu.dot_dimension_numbers<[1], [0], [0], [1], [0, 0, 1, 1], [], []>} : vector<16x128xbf16>, vector<128x32xbf16>, vector<16x32xf32> -> vector<16x32xf32>
    %7 = arith.addf %3, %6 : vector<16x32xf32>
    %c0_6 = arith.constant 0 : index
    %c0_7 = arith.constant 0 : index
    %8 = vector.load %arg7[%c0_6, %c0_7] : memref<16x32xf32, #tpu.memory_space<vmem>>, vector<16x32xf32>
    tpu.vector_store %arg7[%c0_6, %c0_7], %7 {strides = array<i32>} : memref<16x32xf32, #tpu.memory_space<vmem>>, vector<16x32xf32>,
    %c0_i32_8 = arith.constant 0 : i32
    %9 = arith.cmpi eq, %arg2, %c0_i32_8 : i32
    %10 = arith.extui %9 : i1 to i32
    %c0_i32_9 = arith.constant 0 : i32
    %11 = arith.cmpi ne, %10, %c0_i32_9 : i32
    scf.if %11 {
      %c0_10 = arith.constant 0 : index
      %c0_11 = arith.constant 0 : index
      %12 = vector.load %arg7[%c0_10, %c0_11] : memref<16x32xf32, #tpu.memory_space<vmem>>, vector<16x32xf32>
      %c0_12 = arith.constant 0 : index
      %c0_13 = arith.constant 0 : index
      %13 = vector.load %arg5[%c0_12, %c0_13] : memref<1x32xf32, #tpu.memory_space<vmem>>, vector<1x32xf32>
      %14 = vector.broadcast %13 : vector<1x32xf32> to vector<16x32xf32>
      %15 = arith.addf %12, %14 : vector<16x32xf32>
      %16 = arith.truncf %15 : vector<16x32xf32> to vector<16x32xbf16>
      %c0_14 = arith.constant 0 : index
      %c0_15 = arith.constant 0 : index
      %17 = vector.load %arg6[%c0_14, %c0_15] : memref<16x32xbf16, #tpu.memory_space<vmem>>, vector<16x32xbf16>
      tpu.vector_store %arg6[%c0_14, %c0_15], %16 {strides = array<i32>} : memref<16x32xbf16, #tpu.memory_space<vmem>>, vector<16x32xbf16>,
    } else {
    }
    return
  }
  func.func @transform_0(%arg0: i32, %arg1: i32, %arg2: i32) -> (i32, i32) {
    %c0_i32 = arith.constant 0 : i32
    return %arg0, %arg2 : i32, i32
  }
  func.func @transform_1(%arg0: i32, %arg1: i32, %arg2: i32) -> (i32, i32) {
    %c0_i32 = arith.constant 0 : i32
    return %arg2, %arg1 : i32, i32
  }
  func.func @transform_2(%arg0: i32, %arg1: i32, %arg2: i32) -> (i32, i32) {
    %c0_i32 = arith.constant 0 : i32
    %c0_i32_0 = arith.constant 0 : i32
    return %c0_i32, %arg1 : i32, i32
  }
  func.func @transform_3(%arg0: i32, %arg1: i32, %arg2: i32) -> (i32, i32) {
    %c0_i32 = arith.constant 0 : i32
    return %arg0, %arg1 : i32, i32
  }
}

module attributes {stable_mosaic.version = 11 : i64} {
  func.func @_matmul_kernel(%arg0: i32, %arg1: i32, %arg2: i32, %arg3: memref<16x32xbf16, #tpu.memory_space<vmem>>, %arg4: memref<32x128xbf16, #tpu.memory_space<vmem>>, %arg5: memref<1x128xf32, #tpu.memory_space<vmem>>, %arg6: memref<16x128xbf16, #tpu.memory_space<vmem>>, %arg7: memref<16x128xf32, #tpu.memory_space<vmem>>) attributes {dimension_semantics = [#tpu.dimension_semantics<parallel>, #tpu.dimension_semantics<parallel>, #tpu.dimension_semantics<arbitrary>], iteration_bounds = array<i64: 1, 1, 1>, scalar_prefetch = 0 : i64, scratch_operands = 1 : i64, tpu.core_type = #tpu.core_type<tc>, window_params = [{transform_indices = @transform_0, window_bounds = array<i64: 16, 32>}, {transform_indices = @transform_1, window_bounds = array<i64: 32, 128>}, {transform_indices = @transform_2, window_bounds = array<i64: 1, 128>}, {transform_indices = @transform_3, window_bounds = array<i64: 16, 128>}]} {
    %c0_i32 = arith.constant 0 : i32
    %0 = arith.cmpi eq, %arg2, %c0_i32 : i32
    %1 = arith.extui %0 : i1 to i32
    %c0_i32_0 = arith.constant 0 : i32
    %2 = arith.cmpi ne, %1, %c0_i32_0 : i32
    scf.if %2 {
      %cst_10 = arith.constant 0.000000e+00 : f32
      %12 = vector.broadcast %cst_10 : f32 to vector<16x128xf32>
      %c0_11 = arith.constant 0 : index
      %c0_12 = arith.constant 0 : index
      %13 = vector.load %arg7[%c0_11, %c0_12] : memref<16x128xf32, #tpu.memory_space<vmem>>, vector<16x128xf32>
      tpu.vector_store %arg7[%c0_11, %c0_12], %12 {strides = array<i32>} : memref<16x128xf32, #tpu.memory_space<vmem>>, vector<16x128xf32>,
    } else {
    }
    %c0 = arith.constant 0 : index
    %c0_1 = arith.constant 0 : index
    %3 = vector.load %arg7[%c0, %c0_1] : memref<16x128xf32, #tpu.memory_space<vmem>>, vector<16x128xf32>
    %c0_2 = arith.constant 0 : index
    %c0_3 = arith.constant 0 : index
    %4 = vector.load %arg3[%c0_2, %c0_3] : memref<16x32xbf16, #tpu.memory_space<vmem>>, vector<16x32xbf16>
    %c0_4 = arith.constant 0 : index
    %c0_5 = arith.constant 0 : index
    %5 = vector.load %arg4[%c0_4, %c0_5] : memref<32x128xbf16, #tpu.memory_space<vmem>>, vector<32x128xbf16>
    %cst = arith.constant dense<0.000000e+00> : vector<16x128xf32>
    %6 = tpu.matmul %4, %5, %cst {dimension_numbers = #tpu.dot_dimension_numbers<[1], [0], [0], [1], [0, 0, 1, 1], [], []>} : vector<16x32xbf16>, vector<32x128xbf16>, vector<16x128xf32> -> vector<16x128xf32>
    %7 = arith.addf %3, %6 : vector<16x128xf32>
    %c0_6 = arith.constant 0 : index
    %c0_7 = arith.constant 0 : index
    %8 = vector.load %arg7[%c0_6, %c0_7] : memref<16x128xf32, #tpu.memory_space<vmem>>, vector<16x128xf32>
    tpu.vector_store %arg7[%c0_6, %c0_7], %7 {strides = array<i32>} : memref<16x128xf32, #tpu.memory_space<vmem>>, vector<16x128xf32>,
    %c0_i32_8 = arith.constant 0 : i32
    %9 = arith.cmpi eq, %arg2, %c0_i32_8 : i32
    %10 = arith.extui %9 : i1 to i32
    %c0_i32_9 = arith.constant 0 : i32
    %11 = arith.cmpi ne, %10, %c0_i32_9 : i32
    scf.if %11 {
      %c0_10 = arith.constant 0 : index
      %c0_11 = arith.constant 0 : index
      %12 = vector.load %arg7[%c0_10, %c0_11] : memref<16x128xf32, #tpu.memory_space<vmem>>, vector<16x128xf32>
      %c0_12 = arith.constant 0 : index
      %c0_13 = arith.constant 0 : index
      %13 = vector.load %arg5[%c0_12, %c0_13] : memref<1x128xf32, #tpu.memory_space<vmem>>, vector<1x128xf32>
      %14 = vector.broadcast %13 : vector<1x128xf32> to vector<16x128xf32>
      %15 = arith.addf %12, %14 : vector<16x128xf32>
      %cst_14 = arith.constant 0.000000e+00 : f32
      %16 = vector.broadcast %cst_14 : f32 to vector<16x128xf32>
      %17 = arith.maximumf %15, %16 : vector<16x128xf32>
      %18 = arith.truncf %17 : vector<16x128xf32> to vector<16x128xbf16>
      %c0_15 = arith.constant 0 : index
      %c0_16 = arith.constant 0 : index
      %19 = vector.load %arg6[%c0_15, %c0_16] : memref<16x128xbf16, #tpu.memory_space<vmem>>, vector<16x128xbf16>
      tpu.vector_store %arg6[%c0_15, %c0_16], %18 {strides = array<i32>} : memref<16x128xbf16, #tpu.memory_space<vmem>>, vector<16x128xbf16>,
    } else {
    }
    return
  }
  func.func @transform_0(%arg0: i32, %arg1: i32, %arg2: i32) -> (i32, i32) {
    %c0_i32 = arith.constant 0 : i32
    return %arg0, %arg2 : i32, i32
  }
  func.func @transform_1(%arg0: i32, %arg1: i32, %arg2: i32) -> (i32, i32) {
    %c0_i32 = arith.constant 0 : i32
    return %arg2, %arg1 : i32, i32
  }
  func.func @transform_2(%arg0: i32, %arg1: i32, %arg2: i32) -> (i32, i32) {
    %c0_i32 = arith.constant 0 : i32
    %c0_i32_0 = arith.constant 0 : i32
    return %c0_i32, %arg1 : i32, i32
  }
  func.func @transform_3(%arg0: i32, %arg1: i32, %arg2: i32) -> (i32, i32) {
    %c0_i32 = arith.constant 0 : i32
    return %arg0, %arg1 : i32, i32
  }
}

</mosaic_0001>

<llo_original>
// kernel: generator_forward.18
$region0: #{generator_forward.18}
  #allocation0 [shape = 'u32[]', space=smem, size = 0x4, offset = 0x4, fixed_abs, tag = 'smem constant byte address 0x4 - core index']
  #allocation1 [shape = 'u32[144,128]{1,0:T(1,128)}', space=vmem, size = 0x12000, scoped, tag = 'internal scratch']
  %s0 = inlined_call_operand.vmem [shape: bf16[16,32], index: 0, kind: input, shape index: {}]
  %s1 = inlined_call_operand.vmem [shape: bf16[16,32], index: 1, kind: input, shape index: {}]
  %s2 = inlined_call_operand.vmem [shape: f32[1,32], index: 2, kind: input, shape index: {}]
  %s3 = inlined_call_operand.vmem [shape: f32[1,32], index: 3, kind: input, shape index: {}]
  %s4 = inlined_call_operand.vmem [shape: bf16[16,32], index: 4, kind: output, shape index: {}]
  %s5 = sld [smem:[#allocation0]]
  $region26: #{generator_forward.18} parent=0
    _
  %s7 = ssub.s32 1, %s5
  %s8 = scalar_select 0, %s7, %s5
  // Predicated region
  $region2: #{generator_forward.18} parent=0 // pred_check
    _
  $region3: #{generator_forward.18} parent=0 // pred_check_branch
    %10 = sbr.rel (0) target = $region5
  $region4: #{generator_forward.18} parent=0 // pred_region
    _
  $region5: #{generator_forward.18} parent=0 // pred_fallthru
    _
  // Predicated region
  $region6: #{generator_forward.18} parent=0 // pred_check
    _
  $region7: #{generator_forward.18} parent=0 // pred_check_branch
    %12 = sbr.rel (0) target = $region9
  $region8: #{generator_forward.18} parent=0 // pred_region
    _
  $region9: #{generator_forward.18} parent=0 // pred_fallthru
    _
  // Predicated region
  $region10: #{generator_forward.18} parent=0 // pred_check
    _
  $region11: #{generator_forward.18} parent=0 // pred_check_branch
    %14 = sbr.rel (0) target = $region13
  $region12: #{generator_forward.18} parent=0 // pred_region
    _
  $region13: #{generator_forward.18} parent=0 // pred_fallthru
    _
  // Predicated region
  $region14: #{generator_forward.18} parent=0 // pred_check
    _
  $region15: #{generator_forward.18} parent=0 // pred_check_branch
    %16 = sbr.rel (0) target = $region17
  $region16: #{generator_forward.18} parent=0 // pred_region
    _
  $region17: #{generator_forward.18} parent=0 // pred_fallthru
    _
  %v17 = vld [vmem:[%s0] sm:$0xf]
  %v18 = vld [vmem:[%s0 + $0x4] sm:$0xf]
  %v19 = vunpack.c.l.bf16 %v17
  %v20 = vunpack.c.l.bf16 %v18
  %v21 = vld [vmem:[%s1] sm:$0xf]
  %v22 = vld [vmem:[%s1 + $0x4] sm:$0xf]
  %v23 = vunpack.c.l.bf16 %v21
  %v24 = vunpack.c.l.bf16 %v22
  %v25 = vadd.f32 %v19, %v23
  %v26 = vadd.f32 %v20, %v24
  %vm27 = vcmask 261120
  %v28 = vsel %vm27, %v25, 0.0
  %29 = vadd.xlane.f32.xlu0 %v28
  %v30 = vpop.xlane.xlu0 %29
  %v31 = vsel %vm27, %v26, 0.0
  %32 = vadd.xlane.f32.xlu0 %v31
  %v33 = vpop.xlane.xlu0 %32
  %v34 = vrcp.pop 32.0
  %v35 = vmul.f32 %v30, %v34
  %v36 = vmul.f32 %v33, %v34
  %v37 = vsub.f32 %v25, %v35
  %v38 = vsub.f32 %v26, %v36
  %v39 = vmul.f32 %v37, %v37
  %v40 = vmul.f32 %v38, %v38
  %v41 = vsel %vm27, %v39, 0.0
  %42 = vadd.xlane.f32.xlu0 %v41
  %v43 = vpop.xlane.xlu0 %42
  %v44 = vsel %vm27, %v40, 0.0
  %45 = vadd.xlane.f32.xlu0 %v44
  %v46 = vpop.xlane.xlu0 %45
  %v47 = vmul.f32 %v43, %v34
  %v48 = vmul.f32 %v46, %v34
  %v49 = vadd.f32 %v47, 1e-05
  %v50 = vadd.f32 %v48, 1e-05
  %v51 = vrsqrt.pop %v49
  %v52 = vrsqrt.pop %v50
  %v53 = vmul.f32 %v37, %v51
  %v54 = vmul.f32 %v38, %v52
  %v55 = vld [vmem:[%s2] sm:$0x1]
  %v57 = vlaneseq
  %v58 = vshrl.u32 %v57, 7
  %v59 = vsub.s32 0, %v58
  %v60 = vrot.slane %v55, %v59
  %v62 = vmul.f32 %v53, %v60
  %v63 = vmul.f32 %v54, %v60
  %v64 = vld [vmem:[%s3] sm:$0x1]
  %v66 = vlaneseq
  %v67 = vshrl.u32 %v66, 7
  %v68 = vsub.s32 0, %v67
  %v69 = vrot.slane %v64, %v68
  %v71 = vadd.f32 %v62, %v69
  %v72 = vadd.f32 %v63, %v69
  %v73 = vpack.c.bf16 %v72, %v71
  %v75 = vunpack.c.l.b16 %v73
  %v76 = vunpack.c.h.b16 %v73
  %v77 = vpack.c.b16 %v75, %v75
  %v78 = vpack.c.b16 %v76, %v76
  %vm81 = vcmask 257024
  %82 = vst.msk [vmem:[%s4] sm:$0xf] %vm81, %v77
  %83 = vst.msk [vmem:[%s4 + $0x4] sm:$0xf] %vm81, %v78
  // Predicated region
  $region18: #{generator_forward.18} parent=0 // pred_check
    _
  $region19: #{generator_forward.18} parent=0 // pred_check_branch
    %85 = sbr.rel (0) target = $region21
  $region20: #{generator_forward.18} parent=0 // pred_region
    _
  $region21: #{generator_forward.18} parent=0 // pred_fallthru
    _
  // Predicated region
  $region22: #{generator_forward.18} parent=0 // pred_check
    _
  $region23: #{generator_forward.18} parent=0 // pred_check_branch
    %87 = sbr.rel (0) target = $region25
  $region24: #{generator_forward.18} parent=0 // pred_region
    _
  $region25: #{generator_forward.18} parent=0 // pred_fallthru
    _

// kernel: generator_forward.17
$region0: #{generator_forward.17}
  #allocation0 [shape = 'u32[]', space=smem, size = 0x4, offset = 0x4, fixed_abs, tag = 'smem constant byte address 0x4 - core index']
  #allocation1 [shape = 'u32[144,128]{1,0:T(1,128)}', space=vmem, size = 0x12000, scoped, tag = 'internal scratch']
  #allocation2 [shape = 'f32[16,32]{1,0:T(8,128)}', space=vmem, size = 0x2000, scoped, tag = 'scratch operand']
  %s0 = inlined_call_operand.vmem [shape: bf16[16,32], index: 0, kind: input, shape index: {}]
  %s1 = inlined_call_operand.vmem [shape: bf16[32,32], index: 1, kind: input, shape index: {}]
  %s2 = inlined_call_operand.vmem [shape: f32[1,32], index: 2, kind: input, shape index: {}]
  %s3 = inlined_call_operand.vmem [shape: bf16[16,32], index: 3, kind: output, shape index: {}]
  %s4 = sld [smem:[#allocation0]]
  $region30: #{generator_forward.17} parent=0
    _
  %s6 = ssub.s32 1, %s4
  %s7 = scalar_select 0, %s6, %s4
  // Predicated region
  $region2: #{generator_forward.17} parent=0 // pred_check
    _
  $region3: #{generator_forward.17} parent=0 // pred_check_branch
    %9 = sbr.rel (0) target = $region5
  $region4: #{generator_forward.17} parent=0 // pred_region
    _
  $region5: #{generator_forward.17} parent=0 // pred_fallthru
    _
  // Predicated region
  $region6: #{generator_forward.17} parent=0 // pred_check
    _
  $region7: #{generator_forward.17} parent=0 // pred_check_branch
    %11 = sbr.rel (0) target = $region9
  $region8: #{generator_forward.17} parent=0 // pred_region
    _
  $region9: #{generator_forward.17} parent=0 // pred_fallthru
    _
  // Predicated region
  $region10: #{generator_forward.17} parent=0 // pred_check
    _
  $region11: #{generator_forward.17} parent=0 // pred_check_branch
    %13 = sbr.rel (0) target = $region13
  $region12: #{generator_forward.17} parent=0 // pred_region
    _
  $region13: #{generator_forward.17} parent=0 // pred_fallthru
    _
  %p15 = scmp.eq.s32.totalorder 0, 0
  // Predicated region
  $region14: #{generator_forward.17} parent=0 // pred_check
    %p16 = pneg %p15
  $region15: #{generator_forward.17} parent=0 // pred_check_branch
    %18 = sbr.rel (%p16) target = $region17
  $region16: #{generator_forward.17} parent=0 // pred_region
    %vm19 = vcmask 261120
    %20 = vst.msk [vmem:[#allocation2] sm:$0xff] %vm19, 0.0
    %21 = vst.msk [vmem:[#allocation2 + $0x8] sm:$0xff] %vm19, 0.0
  $region17: #{generator_forward.17} parent=0 // pred_fallthru
    _
  %v22 = vld [vmem:[#allocation2] sm:$0xff]
  %v23 = vld [vmem:[#allocation2 + $0x8] sm:$0xff]
  %v24 = vld [vmem:[%s0] sm:$0xf]
  %v25 = vld [vmem:[%s0 + $0x4] sm:$0xf]
  %v26 = vld [vmem:[%s1] sm:$0xf]
  %v27 = vld [vmem:[%s1 + $0x4] sm:$0xf]
  %v28 = vld [vmem:[%s1 + $0x8] sm:$0xf]
  %v29 = vld [vmem:[%s1 + $0xc] sm:$0xf]
  %v32 = vunpack.c.l.b16 %v24
  %v33 = vunpack.c.l.b16 %v25
  %v34 = vpack.c.b16 %v33, %v32
  %v39 = vunpack.c.l.b16 %v26
  %v40 = vunpack.c.l.b16 %v27
  %v41 = vunpack.c.l.b16 %v28
  %v42 = vunpack.c.l.b16 %v29
  %v43 = vpack.c.b16 %v40, %v39
  %v44 = vpack.c.b16 %v42, %v41
  %vm47 = vcmask 261120
  %v49 = vsel %vm47, %v34, 0
  %51 = vmatprep.subr.bf16.mxu0 0
  %52 = vmatpush1.bf16.msra.mxu0 %v43
  %53 = vmatprep.subr.bf16.mxu0 0
  %54 = vmatpush1.bf16.msra.mxu0 %v44
  %55 = vmatprep.subr.bf16.mxu0 0
  %56 = vmatpush1.bf16.msra.mxu0 0
  %57 = vmatprep.subr.bf16.mxu0 0
  %58 = vmatpush1.bf16.msra.mxu0 0
  %59 = vmatprep.subr.bf16.mxu0 0
  %60 = vmatpush1.bf16.msra.mxu0 0
  %61 = vmatprep.subr.bf16.mxu0 0
  %62 = vmatpush1.bf16.msra.mxu0 0
  %63 = vmatprep.subr.bf16.mxu0 0
  %64 = vmatpush1.bf16.msra.mxu0 0
  %65 = vmatprep.subr.bf16.mxu0 0
  %66 = vmatpush1.bf16.msra.mxu0 0
  %67 = vmatprep.subr.bf16.mxu0 0
  %68 = vmatpush1.bf16.msra.mxu0 0
  %69 = vmatprep.subr.bf16.mxu0 0
  %70 = vmatpush1.bf16.msra.mxu0 0
  %71 = vmatprep.subr.bf16.mxu0 0
  %72 = vmatpush1.bf16.msra.mxu0 0
  %73 = vmatprep.subr.bf16.mxu0 0
  %74 = vmatpush1.bf16.msra.mxu0 0
  %75 = vmatprep.subr.bf16.mxu0 0
  %76 = vmatpush1.bf16.msra.mxu0 0
  %77 = vmatprep.subr.bf16.mxu0 0
  %78 = vmatpush1.bf16.msra.mxu0 0
  %79 = vmatprep.subr.bf16.mxu0 0
  %80 = vmatpush1.bf16.msra.mxu0 0
  %81 = vmatprep.subr.bf16.mxu0 0
  %82 = vmatpush1.bf16.msra.mxu0 0
  %83 = vmatprep.mubr.bf16.mxu0 0
  %84 = vmatmul.mubr.bf16.gmra.mrb[0].mxu0 %v49
  %v85 = vpop.f32.mrb[0].mxu0
  %v86 = vadd.f32 0.0, %v85
  %v87 = vpop.f32.mrb[0].mxu0
  %v88 = vpop.f32.mrb[0].mxu0
  %v89 = vadd.f32 0.0, %v88
  %v90 = vpop.f32.mrb[0].mxu0
  %91 = vdwg.mxu0
  %v92 = vadd.f32 %v22, %v86
  %v93 = vadd.f32 %v23, %v89
  %94 = vst.msk [vmem:[#allocation2] sm:$0xff] %vm47, %v92
  %95 = vst.msk [vmem:[#allocation2 + $0x8] sm:$0xff] %vm47, %v93
  // Predicated region
  $region18: #{generator_forward.17} parent=0 // pred_check
    %p96 = pneg %p15
  $region19: #{generator_forward.17} parent=0 // pred_check_branch
    %98 = sbr.rel (%p96) target = $region21
  $region20: #{generator_forward.17} parent=0 // pred_region
    %v99 = vld [vmem:[#allocation2] sm:$0xff]
    %v100 = vld [vmem:[#allocation2 + $0x8] sm:$0xff]
    %v101 = vld [vmem:[%s2] sm:$0x1]
    %v103 = vlaneseq
    %v104 = vshrl.u32 %v103, 7
    %v105 = vsub.s32 0, %v104
    %v106 = vrot.slane %v101, %v105
    %v108 = vadd.f32 %v99, %v106
    %v109 = vadd.f32 %v100, %v106
    %v110 = vpack.c.bf16 %v109, %v108
    %v112 = vunpack.c.l.b16 %v110
    %v113 = vunpack.c.h.b16 %v110
    %v114 = vpack.c.b16 %v112, %v112
    %v115 = vpack.c.b16 %v113, %v113
    %vm118 = vcmask 257024
    %119 = vst.msk [vmem:[%s3] sm:$0xf] %vm118, %v114
    %120 = vst.msk [vmem:[%s3 + $0x4] sm:$0xf] %vm118, %v115
  $region21: #{generator_forward.17} parent=0 // pred_fallthru
    _
  // Predicated region
  $region22: #{generator_forward.17} parent=0 // pred_check
    _
  $region23: #{generator_forward.17} parent=0 // pred_check_branch
    %122 = sbr.rel (0) target = $region25
  $region24: #{generator_forward.17} parent=0 // pred_region
    _
  $region25: #{generator_forward.17} parent=0 // pred_fallthru
    _
  // Predicated region
  $region26: #{generator_forward.17} parent=0 // pred_check
    _
  $region27: #{generator_forward.17} parent=0 // pred_check_branch
    %124 = sbr.rel (0) target = $region29
  $region28: #{generator_forward.17} parent=0 // pred_region
    _
  $region29: #{generator_forward.17} parent=0 // pred_fallthru
    _

// kernel: generator_forward.15
$region0: #{generator_forward.15}
  #allocation0 [shape = 'u32[]', space=smem, size = 0x4, offset = 0x4, fixed_abs, tag = 'smem constant byte address 0x4 - core index']
  #allocation1 [shape = 'u32[144,128]{1,0:T(1,128)}', space=vmem, size = 0x12000, scoped, tag = 'internal scratch']
  #allocation2 [shape = 'f32[16,96]{1,0:T(8,128)}', space=vmem, size = 0x2000, scoped, tag = 'scratch operand']
  %s0 = inlined_call_operand.vmem [shape: bf16[16,32], index: 0, kind: input, shape index: {}]
  %s1 = inlined_call_operand.vmem [shape: bf16[32,96], index: 1, kind: input, shape index: {}]
  %s2 = inlined_call_operand.vmem [shape: f32[1,96], index: 2, kind: input, shape index: {}]
  %s3 = inlined_call_operand.vmem [shape: bf16[16,96], index: 3, kind: output, shape index: {}]
  %s4 = sld [smem:[#allocation0]]
  $region30: #{generator_forward.15} parent=0
    _
  %s6 = ssub.s32 1, %s4
  %s7 = scalar_select 0, %s6, %s4
  // Predicated region
  $region2: #{generator_forward.15} parent=0 // pred_check
    _
  $region3: #{generator_forward.15} parent=0 // pred_check_branch
    %9 = sbr.rel (0) target = $region5
  $region4: #{generator_forward.15} parent=0 // pred_region
    _
  $region5: #{generator_forward.15} parent=0 // pred_fallthru
    _
  // Predicated region
  $region6: #{generator_forward.15} parent=0 // pred_check
    _
  $region7: #{generator_forward.15} parent=0 // pred_check_branch
    %11 = sbr.rel (0) target = $region9
  $region8: #{generator_forward.15} parent=0 // pred_region
    _
  $region9: #{generator_forward.15} parent=0 // pred_fallthru
    _
  // Predicated region
  $region10: #{generator_forward.15} parent=0 // pred_check
    _
  $region11: #{generator_forward.15} parent=0 // pred_check_branch
    %13 = sbr.rel (0) target = $region13
  $region12: #{generator_forward.15} parent=0 // pred_region
    _
  $region13: #{generator_forward.15} parent=0 // pred_fallthru
    _
  %p15 = scmp.eq.s32.totalorder 0, 0
  // Predicated region
  $region14: #{generator_forward.15} parent=0 // pred_check
    %p16 = pneg %p15
  $region15: #{generator_forward.15} parent=0 // pred_check_branch
    %18 = sbr.rel (%p16) target = $region17
  $region16: #{generator_forward.15} parent=0 // pred_region
    %vm19 = vcmask 785408
    %20 = vst.msk [vmem:[#allocation2] sm:$0xff] %vm19, 0.0
    %21 = vst.msk [vmem:[#allocation2 + $0x8] sm:$0xff] %vm19, 0.0
  $region17: #{generator_forward.15} parent=0 // pred_fallthru
    _
  %v22 = vld [vmem:[#allocation2] sm:$0xff]
  %v23 = vld [vmem:[#allocation2 + $0x8] sm:$0xff]
  %v24 = vld [vmem:[%s0] sm:$0xf]
  %v25 = vld [vmem:[%s0 + $0x4] sm:$0xf]
  %v26 = vld [vmem:[%s1] sm:$0xf]
  %v27 = vld [vmem:[%s1 + $0x4] sm:$0xf]
  %v28 = vld [vmem:[%s1 + $0x8] sm:$0xf]
  %v29 = vld [vmem:[%s1 + $0xc] sm:$0xf]
  %v32 = vunpack.c.l.b16 %v24
  %v33 = vunpack.c.l.b16 %v25
  %v34 = vpack.c.b16 %v33, %v32
  %v39 = vunpack.c.l.b16 %v26
  %v40 = vunpack.c.l.b16 %v27
  %v41 = vunpack.c.l.b16 %v28
  %v42 = vunpack.c.l.b16 %v29
  %v43 = vpack.c.b16 %v40, %v39
  %v44 = vpack.c.b16 %v42, %v41
  %vm47 = vcmask 261120
  %v49 = vsel %vm47, %v34, 0
  %51 = vmatprep.subr.bf16.mxu0 0
  %52 = vmatpush1.bf16.msra.mxu0 %v43
  %53 = vmatprep.subr.bf16.mxu0 0
  %54 = vmatpush1.bf16.msra.mxu0 %v44
  %55 = vmatprep.subr.bf16.mxu0 0
  %56 = vmatpush1.bf16.msra.mxu0 0
  %57 = vmatprep.subr.bf16.mxu0 0
  %58 = vmatpush1.bf16.msra.mxu0 0
  %59 = vmatprep.subr.bf16.mxu0 0
  %60 = vmatpush1.bf16.msra.mxu0 0
  %61 = vmatprep.subr.bf16.mxu0 0
  %62 = vmatpush1.bf16.msra.mxu0 0
  %63 = vmatprep.subr.bf16.mxu0 0
  %64 = vmatpush1.bf16.msra.mxu0 0
  %65 = vmatprep.subr.bf16.mxu0 0
  %66 = vmatpush1.bf16.msra.mxu0 0
  %67 = vmatprep.subr.bf16.mxu0 0
  %68 = vmatpush1.bf16.msra.mxu0 0
  %69 = vmatprep.subr.bf16.mxu0 0
  %70 = vmatpush1.bf16.msra.mxu0 0
  %71 = vmatprep.subr.bf16.mxu0 0
  %72 = vmatpush1.bf16.msra.mxu0 0
  %73 = vmatprep.subr.bf16.mxu0 0
  %74 = vmatpush1.bf16.msra.mxu0 0
  %75 = vmatprep.subr.bf16.mxu0 0
  %76 = vmatpush1.bf16.msra.mxu0 0
  %77 = vmatprep.subr.bf16.mxu0 0
  %78 = vmatpush1.bf16.msra.mxu0 0
  %79 = vmatprep.subr.bf16.mxu0 0
  %80 = vmatpush1.bf16.msra.mxu0 0
  %81 = vmatprep.subr.bf16.mxu0 0
  %82 = vmatpush1.bf16.msra.mxu0 0
  %83 = vmatprep.mubr.bf16.mxu0 0
  %84 = vmatmul.mubr.bf16.gmra.mrb[0].mxu0 %v49
  %v85 = vpop.f32.mrb[0].mxu0
  %v86 = vadd.f32 0.0, %v85
  %v87 = vpop.f32.mrb[0].mxu0
  %v88 = vpop.f32.mrb[0].mxu0
  %v89 = vadd.f32 0.0, %v88
  %v90 = vpop.f32.mrb[0].mxu0
  %91 = vdwg.mxu0
  %v92 = vadd.f32 %v22, %v86
  %v93 = vadd.f32 %v23, %v89
  %vm94 = vcmask 785408
  %95 = vst.msk [vmem:[#allocation2] sm:$0xff] %vm94, %v92
  %96 = vst.msk [vmem:[#allocation2 + $0x8] sm:$0xff] %vm94, %v93
  // Predicated region
  $region18: #{generator_forward.15} parent=0 // pred_check
    %p97 = pneg %p15
  $region19: #{generator_forward.15} parent=0 // pred_check_branch
    %99 = sbr.rel (%p97) target = $region21
  $region20: #{generator_forward.15} parent=0 // pred_region
    %v100 = vld [vmem:[#allocation2] sm:$0xff]
    %v101 = vld [vmem:[#allocation2 + $0x8] sm:$0xff]
    %v102 = vld [vmem:[%s2] sm:$0x1]
    %v104 = vlaneseq
    %v105 = vshrl.u32 %v104, 7
    %v106 = vsub.s32 0, %v105
    %v107 = vrot.slane %v102, %v106
    %v109 = vadd.f32 %v100, %v107
    %v110 = vadd.f32 %v101, %v107
    %v111 = vpack.c.bf16 %v110, %v109
    %v113 = vunpack.c.l.b16 %v111
    %v114 = vunpack.c.h.b16 %v111
    %v115 = vpack.c.b16 %v113, %v113
    %v116 = vpack.c.b16 %v114, %v114
    %vm119 = vcmask 781312
    %120 = vst.msk [vmem:[%s3] sm:$0xf] %vm119, %v115
    %121 = vst.msk [vmem:[%s3 + $0x4] sm:$0xf] %vm119, %v116
  $region21: #{generator_forward.15} parent=0 // pred_fallthru
    _
  // Predicated region
  $region22: #{generator_forward.15} parent=0 // pred_check
    _
  $region23: #{generator_forward.15} parent=0 // pred_check_branch
    %123 = sbr.rel (0) target = $region25
  $region24: #{generator_forward.15} parent=0 // pred_region
    _
  $region25: #{generator_forward.15} parent=0 // pred_fallthru
    _
  // Predicated region
  $region26: #{generator_forward.15} parent=0 // pred_check
    _
  $region27: #{generator_forward.15} parent=0 // pred_check_branch
    %125 = sbr.rel (0) target = $region29
  $region28: #{generator_forward.15} parent=0 // pred_region
    _
  $region29: #{generator_forward.15} parent=0 // pred_fallthru
    _

// kernel: generator_forward.16
$region0: #{generator_forward.16}
  #allocation0 [shape = 'u32[]', space=smem, size = 0x4, offset = 0x4, fixed_abs, tag = 'smem constant byte address 0x4 - core index']
  #allocation1 [shape = 'u32[144,128]{1,0:T(1,128)}', space=vmem, size = 0x12000, scoped, tag = 'internal scratch']
  #allocation2 [shape = 'f32[8,1]{1,0:T(8,128)}', space=vmem, size = 0x1000, scoped, tag = 'scratch operand']
  #allocation3 [shape = 'f32[8,1]{1,0:T(8,128)}', space=vmem, size = 0x1000, scoped, tag = 'scratch operand']
  #allocation4 [shape = 'f32[8,8]{1,0:T(8,128)}', space=vmem, size = 0x1000, scoped, tag = 'scratch operand']
  %s0 = inlined_call_operand.vmem [shape: bf16[8,8,8], index: 0, kind: input, shape index: {}]
  %s1 = inlined_call_operand.vmem [shape: bf16[8,8,8], index: 1, kind: input, shape index: {}]
  %s2 = inlined_call_operand.vmem [shape: bf16[8,8,8], index: 2, kind: input, shape index: {}]
  %s3 = inlined_call_operand.vmem [shape: bf16[8,8,8], index: 3, kind: output, shape index: {}]
  %s4 = sld [smem:[#allocation0]]
  $region57: #{generator_forward.16} parent=0
    _
  %s6 = ssub.s32 1, %s4
  %s7 = scalar_select 0, %s6, %s4
  loop: start=0, step=1, limit=10
  $region2: #{generator_forward.16} parent=0 // loop_pre_header
    _
  $region3: #{generator_forward.16} parent=0 // loop_header
    %s9 = sphi 0, %s13
    %p10 = scmp.ge.s32.totalorder %s9, 10
    %s16 = sphi 0, %s35
    %s17 = sphi 0, %s31
    %s18 = sphi 0, %s27
    %s19 = sphi 0, %s16
    %s20 = sphi 0, %s17
    %s21 = sphi 0, %s18
    %s22 = sphi 0, %s19
    %s23 = sphi 0, %s20
    %s24 = sphi 0, %s21
    %s40 = sphi 0, %s42
    %s43 = sphi 0, %s40
    %s44 = sphi 0, %s43
    %s60 = sphi 0, %s44
    %s68 = sphi 0, %s70
    %s71 = sphi 0, %s68
    %s72 = sphi 0, %s71
    %s88 = sphi 0, %s72
    %s96 = sphi 0, %s98
    %s99 = sphi 0, %s96
    %s100 = sphi 0, %s99
    %s116 = sphi 0, %s100
    %s124 = sphi 0, %s126
    %s127 = sphi 0, %s124
    %s128 = sphi 0, %s127
    %s144 = sphi 0, %s128
  $region4: #{generator_forward.16} parent=0 // loop_header_branch
    %12 = sbr.rel (%p10) target = $region8
  $region5: #{generator_forward.16} parent=0 // loop_body
    %s14 = ssub.s32 %s9, 1
    %s15 = ssub.s32 %s9, 2
    %s25 = sadd.s32 1, %s18
    %p26 = scmp.ge.s32.totalorder %s25, 1
    %s27 = scalar_select %p26, 0, %s25
    %s28 = sadd.s32 1, %s17
    %s29 = scalar_select %p26, %s28, %s17
    %p30 = scmp.ge.s32.totalorder %s29, 1
    %s31 = scalar_select %p30, 0, %s29
    %s32 = sadd.s32 1, %s16
    %s33 = scalar_select %p30, %s32, %s16
    %p34 = scmp.ge.s32.totalorder %s33, 8
    %s35 = scalar_select %p34, 0, %s33
    %s36 = ssub.s32 %s16, %s35
    %s37 = ssub.s32 %s17, %s31
    %s38 = sor.u32 %s36, %s37
    %p39 = scmp.eq.s32.totalorder %s38, 0
    %s41 = sadd.s32 %s40, 1
    %s42 = scalar_select %p39, %s40, %s41
    %p45 = pneg %p39
    %p46 = scmp.eq.s32.totalorder %s9, 7
    %p47 = por %p45, %p46
    %p48 = scmp.ne.s32.totalorder %s40, %s43
    %p49 = scmp.eq.s32.totalorder %s9, 0
    %p50 = por %p48, %p49
    %p51 = scmp.ne.s32.totalorder %s40, %s43
    %p52 = scmp.eq.s32.totalorder %s14, 7
    %p53 = por %p51, %p52
    %p54 = scmp.ne.s32.totalorder %s43, %s44
    %p55 = scmp.eq.s32.totalorder %s14, 0
    %p56 = por %p54, %p55
    %p57 = scmp.ne.s32.totalorder %s43, %s44
    %p58 = scmp.eq.s32.totalorder %s15, 7
    %p59 = por %p57, %p58
    %p61 = scmp.ne.s32.totalorder %s44, %s60
    %p62 = scmp.eq.s32.totalorder %s15, 0
    %p63 = por %p61, %p62
    %s64 = ssub.s32 %s16, %s35
    %s65 = ssub.s32 %s18, %s27
    %s66 = sor.u32 %s64, %s65
    %p67 = scmp.eq.s32.totalorder %s66, 0
    %s69 = sadd.s32 %s68, 1
    %s70 = scalar_select %p67, %s68, %s69
    %p73 = pneg %p67
    %p74 = scmp.eq.s32.totalorder %s9, 7
    %p75 = por %p73, %p74
    %p76 = scmp.ne.s32.totalorder %s68, %s71
    %p77 = scmp.eq.s32.totalorder %s9, 0
    %p78 = por %p76, %p77
    %p79 = scmp.ne.s32.totalorder %s68, %s71
    %p80 = scmp.eq.s32.totalorder %s14, 7
    %p81 = por %p79, %p80
    %p82 = scmp.ne.s32.totalorder %s71, %s72
    %p83 = scmp.eq.s32.totalorder %s14, 0
    %p84 = por %p82, %p83
    %p85 = scmp.ne.s32.totalorder %s71, %s72
    %p86 = scmp.eq.s32.totalorder %s15, 7
    %p87 = por %p85, %p86
    %p89 = scmp.ne.s32.totalorder %s72, %s88
    %p90 = scmp.eq.s32.totalorder %s15, 0
    %p91 = por %p89, %p90
    %s92 = ssub.s32 %s16, %s35
    %s93 = ssub.s32 %s18, %s27
    %s94 = sor.u32 %s92, %s93
    %p95 = scmp.eq.s32.totalorder %s94, 0
    %s97 = sadd.s32 %s96, 1
    %s98 = scalar_select %p95, %s96, %s97
    %p101 = pneg %p95
    %p102 = scmp.eq.s32.totalorder %s9, 7
    %p103 = por %p101, %p102
    %p104 = scmp.ne.s32.totalorder %s96, %s99
    %p105 = scmp.eq.s32.totalorder %s9, 0
    %p106 = por %p104, %p105
    %p107 = scmp.ne.s32.totalorder %s96, %s99
    %p108 = scmp.eq.s32.totalorder %s14, 7
    %p109 = por %p107, %p108
    %p110 = scmp.ne.s32.totalorder %s99, %s100
    %p111 = scmp.eq.s32.totalorder %s14, 0
    %p112 = por %p110, %p111
    %p113 = scmp.ne.s32.totalorder %s99, %s100
    %p114 = scmp.eq.s32.totalorder %s15, 7
    %p115 = por %p113, %p114
    %p117 = scmp.ne.s32.totalorder %s100, %s116
    %p118 = scmp.eq.s32.totalorder %s15, 0
    %p119 = por %p117, %p118
    %s120 = ssub.s32 %s16, %s35
    %s121 = ssub.s32 %s17, %s31
    %s122 = sor.u32 %s120, %s121
    %p123 = scmp.eq.s32.totalorder %s122, 0
    %s125 = sadd.s32 %s124, 1
    %s126 = scalar_select %p123, %s124, %s125
    %p129 = pneg %p123
    %p130 = scmp.eq.s32.totalorder %s9, 7
    %p131 = por %p129, %p130
    %p132 = scmp.ne.s32.totalorder %s124, %s127
    %p133 = scmp.eq.s32.totalorder %s9, 0
    %p134 = por %p132, %p133
    %p135 = scmp.ne.s32.totalorder %s124, %s127
    %p136 = scmp.eq.s32.totalorder %s14, 7
    %p137 = por %p135, %p136
    %p138 = scmp.ne.s32.totalorder %s127, %s128
    %p139 = scmp.eq.s32.totalorder %s14, 0
    %p140 = por %p138, %p139
    %p141 = scmp.ne.s32.totalorder %s127, %s128
    %p142 = scmp.eq.s32.totalorder %s15, 7
    %p143 = por %p141, %p142
    %p145 = scmp.ne.s32.totalorder %s128, %s144
    %p146 = scmp.eq.s32.totalorder %s15, 0
    %p147 = por %p145, %p146
    %p148 = scmp.le.s32.totalorder 1, %s9
    %p149 = scmp.lt.s32.totalorder %s9, 9
    %p150 = pnand %p148, %p149
    %p151 = pneg %p150
    // Predicated region
    $region9: #{generator_forward.16} parent=5 // pred_check
      _
    $region10: #{generator_forward.16} parent=5 // pred_check_branch
      %153 = sbr.rel (%p150) target = $region12
    $region11: #{generator_forward.16} parent=5 // pred_region
      %s154 = ssub.s32 %s9, 1
    $region12: #{generator_forward.16} parent=5 // pred_fallthru
      _
    %p155 = scmp.lt.s32.totalorder %s9, 8
    // Predicated region
    $region13: #{generator_forward.16} parent=5 // pred_check
      %p156 = pneg %p155
    $region14: #{generator_forward.16} parent=5 // pred_check_branch
      %158 = sbr.rel (%p156) target = $region16
    $region15: #{generator_forward.16} parent=5 // pred_region
      // Predicated region
      $region17: #{generator_forward.16} parent=15 // pred_check
        %p159 = pneg %p50
      $region18: #{generator_forward.16} parent=15 // pred_check_branch
        %161 = sbr.rel (%p159) target = $region20
      $region19: #{generator_forward.16} parent=15 // pred_region
        %p162 = scmp.lt.s32.totalorder %s16, 7
        %s163 = scalar_select %p162, %s16, 7
        %p164 = scmp.lt.s32.totalorder %s17, 0
        %s165 = scalar_select %p164, %s17, 0
        %s166 = sadd.s32 %s165, %s163
        %s167 = smul.addr %s166, 4
        %s168 = scalar_lea.vmem %s0, %s167
      $region20: #{generator_forward.16} parent=15 // pred_fallthru
        _
      // Predicated region
      $region21: #{generator_forward.16} parent=15 // pred_check
        %p169 = pneg %p78
      $region22: #{generator_forward.16} parent=15 // pred_check_branch
        %171 = sbr.rel (%p169) target = $region24
      $region23: #{generator_forward.16} parent=15 // pred_region
        %p172 = scmp.lt.s32.totalorder %s16, 7
        %s173 = scalar_select %p172, %s16, 7
        %p174 = scmp.lt.s32.totalorder %s18, 0
        %s175 = scalar_select %p174, %s18, 0
        %s176 = sadd.s32 %s175, %s173
        %s177 = smul.addr %s176, 4
        %s178 = scalar_lea.vmem %s1, %s177
      $region24: #{generator_forward.16} parent=15 // pred_fallthru
        _
      // Predicated region
      $region25: #{generator_forward.16} parent=15 // pred_check
        %p179 = pneg %p106
      $region26: #{generator_forward.16} parent=15 // pred_check_branch
        %181 = sbr.rel (%p179) target = $region28
      $region27: #{generator_forward.16} parent=15 // pred_region
        %p182 = scmp.lt.s32.totalorder %s16, 7
        %s183 = scalar_select %p182, %s16, 7
        %p184 = scmp.lt.s32.totalorder %s18, 0
        %s185 = scalar_select %p184, %s18, 0
        %s186 = sadd.s32 %s185, %s183
        %s187 = smul.addr %s186, 4
        %s188 = scalar_lea.vmem %s2, %s187
      $region28: #{generator_forward.16} parent=15 // pred_fallthru
        _
    $region16: #{generator_forward.16} parent=5 // pred_fallthru
      _
    %p189 = scmp.le.s32.totalorder 1, %s9
    %p190 = scmp.lt.s32.totalorder %s9, 9
    %p191 = pnand %p189, %p190
    %p192 = pneg %p191
    // Predicated region
    $region29: #{generator_forward.16} parent=5 // pred_check
      _
    $region30: #{generator_forward.16} parent=5 // pred_check_branch
      %194 = sbr.rel (%p191) target = $region32
    $region31: #{generator_forward.16} parent=5 // pred_region
      %s195 = ssub.s32 %s9, 1
      %p196 = scmp.lt.s32.totalorder %s19, 7
      %s197 = scalar_select %p196, %s19, 7
      %p198 = scmp.lt.s32.totalorder %s20, 0
      %s199 = scalar_select %p198, %s20, 0
      %s200 = sadd.s32 %s199, %s197
      %s201 = smul.addr %s200, 4
      %s202 = scalar_lea.vmem %s0, %s201
      %p203 = pneg %p56
      %p204 = pneg %p53
      %p205 = scmp.lt.s32.totalorder %s19, 7
      %s206 = scalar_select %p205, %s19, 7
      %p207 = scmp.lt.s32.totalorder %s21, 0
      %s208 = scalar_select %p207, %s21, 0
      %s209 = sadd.s32 %s208, %s206
      %s210 = smul.addr %s209, 4
      %s211 = scalar_lea.vmem %s1, %s210
      %p212 = pneg %p84
      %p213 = pneg %p81
      %p214 = scmp.lt.s32.totalorder %s19, 7
      %s215 = scalar_select %p214, %s19, 7
      %p216 = scmp.lt.s32.totalorder %s21, 0
      %s217 = scalar_select %p216, %s21, 0
      %s218 = sadd.s32 %s217, %s215
      %s219 = smul.addr %s218, 4
      %s220 = scalar_lea.vmem %s2, %s219
      %p221 = pneg %p112
      %p222 = pneg %p109
      %p223 = pneg %p140
      %p224 = pneg %p137
      %p225 = scmp.lt.s32.totalorder %s19, 7
      %s226 = scalar_select %p225, %s19, 7
      %p227 = scmp.lt.s32.totalorder %s20, 0
      %s228 = scalar_select %p227, %s20, 0
      %s229 = sadd.s32 %s228, %s226
      %s230 = smul.addr %s229, 4
      %s231 = scalar_lea.vmem %s3, %s230
      %p232 = scmp.lt.s32.totalorder %s19, 7
      %s233 = scalar_select %p232, %s19, 7
      %p234 = scmp.lt.s32.totalorder %s20, 0
      %s235 = scalar_select %p234, %s20, 0
      %s236 = sadd.s32 %s235, %s233
      %s237 = smul.addr %s236, 4
      %s238 = scalar_lea.vmem %s0, %s237
      %p239 = scmp.lt.s32.totalorder %s19, 7
      %s240 = scalar_select %p239, %s19, 7
      %p241 = scmp.lt.s32.totalorder %s21, 0
      %s242 = scalar_select %p241, %s21, 0
      %s243 = sadd.s32 %s242, %s240
      %s244 = smul.addr %s243, 4
      %s245 = scalar_lea.vmem %s1, %s244
      %p246 = scmp.lt.s32.totalorder %s19, 7
      %s247 = scalar_select %p246, %s19, 7
      %p248 = scmp.lt.s32.totalorder %s21, 0
      %s249 = scalar_select %p248, %s21, 0
      %s250 = sadd.s32 %s249, %s247
      %s251 = smul.addr %s250, 4
      %s252 = scalar_lea.vmem %s2, %s251
      %p253 = scmp.lt.s32.totalorder %s19, 7
      %s254 = scalar_select %p253, %s19, 7
      %p255 = scmp.lt.s32.totalorder %s20, 0
      %s256 = scalar_select %p255, %s20, 0
      %s257 = sadd.s32 %s256, %s254
      %s258 = smul.addr %s257, 4
      %s259 = scalar_lea.vmem %s3, %s258
      %p261 = scmp.eq.s32.totalorder %s21, 0
      // Predicated region
      $region33: #{generator_forward.16} parent=31 // pred_check
        %p262 = pneg %p261
      $region34: #{generator_forward.16} parent=31 // pred_check_branch
        %264 = sbr.rel (%p262) target = $region36
      $region35: #{generator_forward.16} parent=31 // pred_region
        %vm265 = vcmask 7168
        %266 = vst.msk [vmem:[#allocation2] sm:$0xff] %vm265, -inf
        %267 = vst.msk [vmem:[#allocation3] sm:$0xff] %vm265, 0.0
        %vm268 = vcmask 64512
        %269 = vst.msk [vmem:[#allocation4] sm:$0xff] %vm268, 0.0
      $region36: #{generator_forward.16} parent=31 // pred_fallthru
        _
      %s270 = smul.u32 %s20, 8
      %s271 = sadd.s32 %s270, 7
      %s272 = smul.u32 %s21, 8
      %p273 = scmp.ge.s32.totalorder %s271, %s272
      // Predicated region
      $region37: #{generator_forward.16} parent=31 // pred_check
        %p274 = pneg %p273
      $region38: #{generator_forward.16} parent=31 // pred_check_branch
        %276 = sbr.rel (%p274) target = $region40
      $region39: #{generator_forward.16} parent=31 // pred_region
        %v277 = vld [vmem:[%s238] sm:$0xf]
        %v278 = vld [vmem:[%s245] sm:$0xf]
        %v279 = vld [vmem:[%s252] sm:$0xf]
        %vm280 = vcmask 64512
        %v282 = vsel %vm280, %v277, 0
        %v285 = vsel %vm280, %v278, 0
        %287 = vmatprep.subr.bf16.mxu0 0
        %288 = vmatpush1.bf16.xpose.msra.mxu0 %v285
        %289 = vmatprep.subr.bf16.mxu0 0
        %290 = vmatpush1.bf16.xpose.msra.mxu0 0
        %291 = vmatprep.subr.bf16.mxu0 0
        %292 = vmatpush1.bf16.xpose.msra.mxu0 0
        %293 = vmatprep.subr.bf16.mxu0 0
        %294 = vmatpush1.bf16.xpose.msra.mxu0 0
        %295 = vmatprep.subr.bf16.mxu0 0
        %296 = vmatpush1.bf16.xpose.msra.mxu0 0
        %297 = vmatprep.subr.bf16.mxu0 0
        %298 = vmatpush1.bf16.xpose.msra.mxu0 0
        %299 = vmatprep.subr.bf16.mxu0 0
        %300 = vmatpush1.bf16.xpose.msra.mxu0 0
        %301 = vmatprep.subr.bf16.mxu0 0
        %302 = vmatpush1.bf16.xpose.msra.mxu0 0
        %303 = vmatprep.subr.bf16.mxu0 0
        %304 = vmatpush1.bf16.xpose.msra.mxu0 0
        %305 = vmatprep.subr.bf16.mxu0 0
        %306 = vmatpush1.bf16.xpose.msra.mxu0 0
        %307 = vmatprep.subr.bf16.mxu0 0
        %308 = vmatpush1.bf16.xpose.msra.mxu0 0
        %309 = vmatprep.subr.bf16.mxu0 0
        %310 = vmatpush1.bf16.xpose.msra.mxu0 0
        %311 = vmatprep.subr.bf16.mxu0 0
        %312 = vmatpush1.bf16.xpose.msra.mxu0 0
        %313 = vmatprep.subr.bf16.mxu0 0
        %314 = vmatpush1.bf16.xpose.msra.mxu0 0
        %315 = vmatprep.subr.bf16.mxu0 0
        %316 = vmatpush1.bf16.xpose.msra.mxu0 0
        %317 = vmatprep.subr.bf16.mxu0 0
        %318 = vmatpush1.bf16.xpose.msra.mxu0 0
        %319 = vmatprep.mubr.bf16.mxu0 0
        %320 = vmatmul.mubr.bf16.gmra.mrb[0].mxu0 %v282
        %v321 = vpop.f32.mrb[0].mxu0
        %v322 = vadd.f32 0.0, %v321
        %v323 = vpop.f32.mrb[0].mxu0
        %v324 = vpop.f32.mrb[0].mxu0
        %v325 = vpop.f32.mrb[0].mxu0
        %326 = vdwg.mxu0
        %v327 = vmul.f32 %v322, 0.35355338
        %v328 = vlaneseq
        %v329 = vshrl.u32 %v328, 7
        %v330 = vstv %s270
        %v331 = vadd.s32 %v330, %v329
        %v332 = vlaneseq
        %v333 = vand.u32 %v332, 127
        %v334 = vstv %s272
        %v335 = vadd.s32 %v334, %v333
        %vm336 = vcmp.ge.s32.totalorder %v331, %v335
        %v337 = vsel %vm336, %v327, -1e+30
        %v338 = vld [vmem:[#allocation2] sm:$0xff]
        %v339 = vsel %vm280, %v337, -inf
        %340 = vmax.xlane.f32.xlu0 %v339
        %v341 = vpop.xlane.xlu0 %340
        %v342 = vmax.f32 %v338, %v341
        %v343 = vsub.f32 %v338, %v342
        %v344 = vmul.f32 %v343, 1.442695
        %v345 = vpow.pop %v344
        %347 = vset.pattern.permute.xlu0 0
        %348 = vperm.xlu0 %347, %v342
        %v349 = vpop.permute.xlu0 %348
        %v351 = vsub.f32 %v337, %v349
        %v352 = vmul.f32 %v351, 1.442695
        %v353 = vpow.pop %v352
        %v354 = vld [vmem:[#allocation3] sm:$0xff]
        %v355 = vmul.f32 %v345, %v354
        %v356 = vsel %vm280, %v353, 0.0
        %357 = vadd.xlane.f32.xlu0 %v356
        %v358 = vpop.xlane.xlu0 %357
        %v359 = vadd.f32 %v355, %v358
        %vm360 = vcmask 7168
        %361 = vst.msk [vmem:[#allocation3] sm:$0xff] %vm360, %v359
        %v362 = vld [vmem:[#allocation4] sm:$0xff]
        %364 = vset.pattern.permute.xlu0 0
        %365 = vperm.xlu0 %364, %v345
        %v366 = vpop.permute.xlu0 %365
        %v368 = vmul.f32 %v366, %v362
        %v369 = vpack.c.bf16 %v353, %v353
        %v371 = vsel %vm280, %v369, 0
        %vm373 = vcmask 1043456
        %v375 = vsel %vm373, %v279, 0
        %377 = vmatprep.subr.bf16.mxu0 0
        %378 = vmatpush1.bf16.msra.mxu0 %v375
        %379 = vmatprep.subr.bf16.mxu0 0
        %380 = vmatpush1.bf16.msra.mxu0 0
        %381 = vmatprep.subr.bf16.mxu0 0
        %382 = vmatpush1.bf16.msra.mxu0 0
        %383 = vmatprep.subr.bf16.mxu0 0
        %384 = vmatpush1.bf16.msra.mxu0 0
        %385 = vmatprep.subr.bf16.mxu0 0
        %386 = vmatpush1.bf16.msra.mxu0 0
        %387 = vmatprep.subr.bf16.mxu0 0
        %388 = vmatpush1.bf16.msra.mxu0 0
        %389 = vmatprep.subr.bf16.mxu0 0
        %390 = vmatpush1.bf16.msra.mxu0 0
        %391 = vmatprep.subr.bf16.mxu0 0
        %392 = vmatpush1.bf16.msra.mxu0 0
        %393 = vmatprep.subr.bf16.mxu0 0
        %394 = vmatpush1.bf16.msra.mxu0 0
        %395 = vmatprep.subr.bf16.mxu0 0
        %396 = vmatpush1.bf16.msra.mxu0 0
        %397 = vmatprep.subr.bf16.mxu0 0
        %398 = vmatpush1.bf16.msra.mxu0 0
        %399 = vmatprep.subr.bf16.mxu0 0
        %400 = vmatpush1.bf16.msra.mxu0 0
        %401 = vmatprep.subr.bf16.mxu0 0
        %402 = vmatpush1.bf16.msra.mxu0 0
        %403 = vmatprep.subr.bf16.mxu0 0
        %404 = vmatpush1.bf16.msra.mxu0 0
        %405 = vmatprep.subr.bf16.mxu0 0
        %406 = vmatpush1.bf16.msra.mxu0 0
        %407 = vmatprep.subr.bf16.mxu0 0
        %408 = vmatpush1.bf16.msra.mxu0 0
        %409 = vmatprep.mubr.bf16.mxu0 0
        %410 = vmatmul.mubr.bf16.gmra.mrb[0].mxu0 %v371
        %v411 = vpop.f32.mrb[0].mxu0
        %v412 = vadd.f32 0.0, %v411
        %v413 = vpop.f32.mrb[0].mxu0
        %v414 = vpop.f32.mrb[0].mxu0
        %v415 = vpop.f32.mrb[0].mxu0
        %416 = vdwg.mxu0
        %v417 = vadd.f32 %v368, %v412
        %418 = vst.msk [vmem:[#allocation4] sm:$0xff] %vm280, %v417
        %419 = vst.msk [vmem:[#allocation2] sm:$0xff] %vm360, %v342
      $region40: #{generator_forward.16} parent=31 // pred_fallthru
        _
      // Predicated region
      $region41: #{generator_forward.16} parent=31 // pred_check
        %p420 = pneg %p261
      $region42: #{generator_forward.16} parent=31 // pred_check_branch
        %422 = sbr.rel (%p420) target = $region44
      $region43: #{generator_forward.16} parent=31 // pred_region
        %v423 = vld [vmem:[#allocation3] sm:$0xff]
        %v424 = vrcp.pop %v423
        %v425 = vld [vmem:[#allocation4] sm:$0xff]
        %427 = vset.pattern.permute.xlu0 0
        %428 = vperm.xlu0 %427, %v424
        %v429 = vpop.permute.xlu0 %428
        %v431 = vmul.f32 %v425, %v429
        %v432 = vpack.c.bf16 %v431, %v431
        %vm433 = vcmask 60416
        %434 = vst.msk [vmem:[%s259] sm:$0xf] %vm433, %v432
      $region44: #{generator_forward.16} parent=31 // pred_fallthru
        _
      %p435 = scmp.lt.s32.totalorder %s19, 7
      %s436 = scalar_select %p435, %s19, 7
      %p437 = scmp.lt.s32.totalorder %s20, 0
      %s438 = scalar_select %p437, %s20, 0
      %s439 = sadd.s32 %s438, %s436
      %s440 = smul.addr %s439, 4
      %s441 = scalar_lea.vmem %s3, %s440
      // Predicated region
      $region45: #{generator_forward.16} parent=31 // pred_check
        %p442 = pneg %p137
      $region46: #{generator_forward.16} parent=31 // pred_check_branch
        %444 = sbr.rel (%p442) target = $region48
      $region47: #{generator_forward.16} parent=31 // pred_region
        _
      $region48: #{generator_forward.16} parent=31 // pred_fallthru
        _
    $region32: #{generator_forward.16} parent=5 // pred_fallthru
      _
    %p445 = scmp.le.s32.totalorder 2, %s9
    // Predicated region
    $region49: #{generator_forward.16} parent=5 // pred_check
      %p446 = pneg %p445
    $region50: #{generator_forward.16} parent=5 // pred_check_branch
      %448 = sbr.rel (%p446) target = $region52
    $region51: #{generator_forward.16} parent=5 // pred_region
      %s449 = ssub.s32 %s9, 2
      // Predicated region
      $region53: #{generator_forward.16} parent=51 // pred_check
        %p450 = pneg %p143
      $region54: #{generator_forward.16} parent=51 // pred_check_branch
        %452 = sbr.rel (%p450) target = $region56
      $region55: #{generator_forward.16} parent=51 // pred_region
        %p453 = scmp.lt.s32.totalorder %s22, 7
        %s454 = scalar_select %p453, %s22, 7
        %p455 = scmp.lt.s32.totalorder %s23, 0
        %s456 = scalar_select %p455, %s23, 0
        %s457 = sadd.s32 %s456, %s454
        %s458 = smul.addr %s457, 4
        %s459 = scalar_lea.vmem %s3, %s458
      $region56: #{generator_forward.16} parent=51 // pred_fallthru
        _
    $region52: #{generator_forward.16} parent=5 // pred_fallthru
      _
  $region6: #{generator_forward.16} parent=0 // loop_footer
    %s13 = sadd.s32 1, %s9
  $region7: #{generator_forward.16} parent=0 // loop_footer_branch
    %8 = sbr.rel target = $region3
  $region8: #{generator_forward.16} parent=0 // loop_exit
    _

// kernel: generator_forward.29
$region0: #{generator_forward.29}
  #allocation0 [shape = 'u32[]', space=smem, size = 0x4, offset = 0x4, fixed_abs, tag = 'smem constant byte address 0x4 - core index']
  #allocation1 [shape = 'u32[144,128]{1,0:T(1,128)}', space=vmem, size = 0x12000, scoped, tag = 'internal scratch']
  #allocation2 [shape = 'f32[16,64]{1,0:T(8,128)}', space=vmem, size = 0x2000, scoped, tag = 'scratch operand']
  %s0 = inlined_call_operand.vmem [shape: bf16[16,32], index: 0, kind: input, shape index: {}]
  %s1 = inlined_call_operand.vmem [shape: bf16[32,64], index: 1, kind: input, shape index: {}]
  %s2 = inlined_call_operand.vmem [shape: f32[1,64], index: 2, kind: input, shape index: {}]
  %s3 = inlined_call_operand.hbm [shape: f32[16,64], index: 3, kind: output, shape index: {}]
  %s4 = sld [smem:[#allocation0]]
  $region30: #{generator_forward.29} parent=0
    _
  %s6 = ssub.s32 1, %s4
  %s7 = scalar_select 0, %s6, %s4
  $region1: #{generator_forward.29} parent=0
    #allocation3 [shape = 'u8[8192]{0}', space=vmem, size = 0x2000, scoped, tag = 'output window, operand 0, single buffered']
    #allocation4 [shape = 's32[1]{0}', space=sflag, size = 0x4, scoped, tag = 'scoped memory for generator_forward.29']
    %8 = vsyncpa [#allocation4], 0
    // Predicated region
    $region2: #{generator_forward.29} parent=1 // pred_check
      _
    $region3: #{generator_forward.29} parent=1 // pred_check_branch
      %10 = sbr.rel (0) target = $region5
    $region4: #{generator_forward.29} parent=1 // pred_region
      _
    $region5: #{generator_forward.29} parent=1 // pred_fallthru
      _
    // Predicated region
    $region6: #{generator_forward.29} parent=1 // pred_check
      _
    $region7: #{generator_forward.29} parent=1 // pred_check_branch
      %12 = sbr.rel (0) target = $region9
    $region8: #{generator_forward.29} parent=1 // pred_region
      _
    $region9: #{generator_forward.29} parent=1 // pred_fallthru
      _
    // Predicated region
    $region10: #{generator_forward.29} parent=1 // pred_check
      _
    $region11: #{generator_forward.29} parent=1 // pred_check_branch
      %14 = sbr.rel (0) target = $region13
    $region12: #{generator_forward.29} parent=1 // pred_region
      _
    $region13: #{generator_forward.29} parent=1 // pred_fallthru
      _
    %p16 = scmp.eq.s32.totalorder 0, 0
    // Predicated region
    $region14: #{generator_forward.29} parent=1 // pred_check
      %p17 = pneg %p16
    $region15: #{generator_forward.29} parent=1 // pred_check_branch
      %19 = sbr.rel (%p17) target = $region17
    $region16: #{generator_forward.29} parent=1 // pred_region
      %vm20 = vcmask 523264
      %21 = vst.msk [vmem:[#allocation2] sm:$0xff] %vm20, 0.0
      %22 = vst.msk [vmem:[#allocation2 + $0x8] sm:$0xff] %vm20, 0.0
    $region17: #{generator_forward.29} parent=1 // pred_fallthru
      _
    %v23 = vld [vmem:[#allocation2] sm:$0xff]
    %v24 = vld [vmem:[#allocation2 + $0x8] sm:$0xff]
    %v25 = vld [vmem:[%s0] sm:$0xf]
    %v26 = vld [vmem:[%s0 + $0x4] sm:$0xf]
    %v27 = vld [vmem:[%s1] sm:$0xf]
    %v28 = vld [vmem:[%s1 + $0x4] sm:$0xf]
    %v29 = vld [vmem:[%s1 + $0x8] sm:$0xf]
    %v30 = vld [vmem:[%s1 + $0xc] sm:$0xf]
    %v33 = vunpack.c.l.b16 %v25
    %v34 = vunpack.c.l.b16 %v26
    %v35 = vpack.c.b16 %v34, %v33
    %v40 = vunpack.c.l.b16 %v27
    %v41 = vunpack.c.l.b16 %v28
    %v42 = vunpack.c.l.b16 %v29
    %v43 = vunpack.c.l.b16 %v30
    %v44 = vpack.c.b16 %v41, %v40
    %v45 = vpack.c.b16 %v43, %v42
    %vm48 = vcmask 261120
    %v50 = vsel %vm48, %v35, 0
    %52 = vmatprep.subr.bf16.mxu0 0
    %53 = vmatpush1.bf16.msra.mxu0 %v44
    %54 = vmatprep.subr.bf16.mxu0 0
    %55 = vmatpush1.bf16.msra.mxu0 %v45
    %56 = vmatprep.subr.bf16.mxu0 0
    %57 = vmatpush1.bf16.msra.mxu0 0
    %58 = vmatprep.subr.bf16.mxu0 0
    %59 = vmatpush1.bf16.msra.mxu0 0
    %60 = vmatprep.subr.bf16.mxu0 0
    %61 = vmatpush1.bf16.msra.mxu0 0
    %62 = vmatprep.subr.bf16.mxu0 0
    %63 = vmatpush1.bf16.msra.mxu0 0
    %64 = vmatprep.subr.bf16.mxu0 0
    %65 = vmatpush1.bf16.msra.mxu0 0
    %66 = vmatprep.subr.bf16.mxu0 0
    %67 = vmatpush1.bf16.msra.mxu0 0
    %68 = vmatprep.subr.bf16.mxu0 0
    %69 = vmatpush1.bf16.msra.mxu0 0
    %70 = vmatprep.subr.bf16.mxu0 0
    %71 = vmatpush1.bf16.msra.mxu0 0
    %72 = vmatprep.subr.bf16.mxu0 0
    %73 = vmatpush1.bf16.msra.mxu0 0
    %74 = vmatprep.subr.bf16.mxu0 0
    %75 = vmatpush1.bf16.msra.mxu0 0
    %76 = vmatprep.subr.bf16.mxu0 0
    %77 = vmatpush1.bf16.msra.mxu0 0
    %78 = vmatprep.subr.bf16.mxu0 0
    %79 = vmatpush1.bf16.msra.mxu0 0
    %80 = vmatprep.subr.bf16.mxu0 0
    %81 = vmatpush1.bf16.msra.mxu0 0
    %82 = vmatprep.subr.bf16.mxu0 0
    %83 = vmatpush1.bf16.msra.mxu0 0
    %84 = vmatprep.mubr.bf16.mxu0 0
    %85 = vmatmul.mubr.bf16.gmra.mrb[0].mxu0 %v50
    %v86 = vpop.f32.mrb[0].mxu0
    %v87 = vadd.f32 0.0, %v86
    %v88 = vpop.f32.mrb[0].mxu0
    %v89 = vpop.f32.mrb[0].mxu0
    %v90 = vadd.f32 0.0, %v89
    %v91 = vpop.f32.mrb[0].mxu0
    %92 = vdwg.mxu0
    %v93 = vadd.f32 %v23, %v87
    %v94 = vadd.f32 %v24, %v90
    %vm95 = vcmask 523264
    %96 = vst.msk [vmem:[#allocation2] sm:$0xff] %vm95, %v93
    %97 = vst.msk [vmem:[#allocation2 + $0x8] sm:$0xff] %vm95, %v94
    // Predicated region
    $region18: #{generator_forward.29} parent=1 // pred_check
      %p98 = pneg %p16
    $region19: #{generator_forward.29} parent=1 // pred_check_branch
      %100 = sbr.rel (%p98) target = $region21
    $region20: #{generator_forward.29} parent=1 // pred_region
      %v101 = vld [vmem:[#allocation2] sm:$0xff]
      %v102 = vld [vmem:[#allocation2 + $0x8] sm:$0xff]
      %v103 = vld [vmem:[%s2] sm:$0x1]
      %v105 = vlaneseq
      %v106 = vshrl.u32 %v105, 7
      %v107 = vsub.s32 0, %v106
      %v108 = vrot.slane %v103, %v107
      %v110 = vadd.f32 %v101, %v108
      %v111 = vadd.f32 %v102, %v108
      %112 = vst.msk [vmem:[#allocation3] sm:$0xff] %vm95, %v110
      %113 = vst.msk [vmem:[#allocation3 + $0x8] sm:$0xff] %vm95, %v111
    $region21: #{generator_forward.29} parent=1 // pred_fallthru
      _
    // Predicated region
    $region22: #{generator_forward.29} parent=1 // pred_check
      _
    $region23: #{generator_forward.29} parent=1 // pred_check_branch
      %115 = sbr.rel (0) target = $region25
    $region24: #{generator_forward.29} parent=1 // pred_region
      %s117 = ssub.s32 256, 256
      %118 = vsyncadd [#allocation4], %s117
      %s119 = sshll.u32 [#allocation3], 4
      %s120 = int_to_ptr.vmem [resolvable:$true] %s119
      %125 = dma.vmem_to_hbm [thread:$0]  %s120, 256, %s3, [#allocation4], 128, 128, 8
    $region25: #{generator_forward.29} parent=1 // pred_fallthru
      _
    // Predicated region
    $region26: #{generator_forward.29} parent=1 // pred_check
      _
    $region27: #{generator_forward.29} parent=1 // pred_check_branch
      %127 = sbr.rel (0) target = $region29
    $region28: #{generator_forward.29} parent=1 // pred_region
      %128 = dma.done [#allocation4], 256
    $region29: #{generator_forward.29} parent=1 // pred_fallthru
      _
    %129 = vsyncpa [#allocation4], 1

// kernel: generator_forward.20
$region0: #{generator_forward.20}
  #allocation0 [shape = 'u32[]', space=smem, size = 0x4, offset = 0x4, fixed_abs, tag = 'smem constant byte address 0x4 - core index']
  #allocation1 [shape = 'u32[144,128]{1,0:T(1,128)}', space=vmem, size = 0x12000, scoped, tag = 'internal scratch']
  #allocation2 [shape = 'f32[16,32]{1,0:T(8,128)}', space=vmem, size = 0x2000, scoped, tag = 'scratch operand']
  %s0 = inlined_call_operand.vmem [shape: bf16[16,128], index: 0, kind: input, shape index: {}]
  %s1 = inlined_call_operand.vmem [shape: bf16[128,32], index: 1, kind: input, shape index: {}]
  %s2 = inlined_call_operand.vmem [shape: f32[1,32], index: 2, kind: input, shape index: {}]
  %s3 = inlined_call_operand.vmem [shape: bf16[16,32], index: 3, kind: output, shape index: {}]
  %s4 = sld [smem:[#allocation0]]
  $region30: #{generator_forward.20} parent=0
    _
  %s6 = ssub.s32 1, %s4
  %s7 = scalar_select 0, %s6, %s4
  // Predicated region
  $region2: #{generator_forward.20} parent=0 // pred_check
    _
  $region3: #{generator_forward.20} parent=0 // pred_check_branch
    %9 = sbr.rel (0) target = $region5
  $region4: #{generator_forward.20} parent=0 // pred_region
    _
  $region5: #{generator_forward.20} parent=0 // pred_fallthru
    _
  // Predicated region
  $region6: #{generator_forward.20} parent=0 // pred_check
    _
  $region7: #{generator_forward.20} parent=0 // pred_check_branch
    %11 = sbr.rel (0) target = $region9
  $region8: #{generator_forward.20} parent=0 // pred_region
    _
  $region9: #{generator_forward.20} parent=0 // pred_fallthru
    _
  // Predicated region
  $region10: #{generator_forward.20} parent=0 // pred_check
    _
  $region11: #{generator_forward.20} parent=0 // pred_check_branch
    %13 = sbr.rel (0) target = $region13
  $region12: #{generator_forward.20} parent=0 // pred_region
    _
  $region13: #{generator_forward.20} parent=0 // pred_fallthru
    _
  %p15 = scmp.eq.s32.totalorder 0, 0
  // Predicated region
  $region14: #{generator_forward.20} parent=0 // pred_check
    %p16 = pneg %p15
  $region15: #{generator_forward.20} parent=0 // pred_check_branch
    %18 = sbr.rel (%p16) target = $region17
  $region16: #{generator_forward.20} parent=0 // pred_region
    %vm19 = vcmask 261120
    %20 = vst.msk [vmem:[#allocation2] sm:$0xff] %vm19, 0.0
    %21 = vst.msk [vmem:[#allocation2 + $0x8] sm:$0xff] %vm19, 0.0
  $region17: #{generator_forward.20} parent=0 // pred_fallthru
    _
  %v22 = vld [vmem:[#allocation2] sm:$0xff]
  %v23 = vld [vmem:[#allocation2 + $0x8] sm:$0xff]
  %v24 = vld [vmem:[%s0] sm:$0xf]
  %v25 = vld [vmem:[%s0 + $0x4] sm:$0xf]
  %v26 = vld [vmem:[%s1] sm:$0xf]
  %v27 = vld [vmem:[%s1 + $0x4] sm:$0xf]
  %v28 = vld [vmem:[%s1 + $0x8] sm:$0xf]
  %v29 = vld [vmem:[%s1 + $0xc] sm:$0xf]
  %v30 = vld [vmem:[%s1 + $0x10] sm:$0xf]
  %v31 = vld [vmem:[%s1 + $0x14] sm:$0xf]
  %v32 = vld [vmem:[%s1 + $0x18] sm:$0xf]
  %v33 = vld [vmem:[%s1 + $0x1c] sm:$0xf]
  %v34 = vld [vmem:[%s1 + $0x20] sm:$0xf]
  %v35 = vld [vmem:[%s1 + $0x24] sm:$0xf]
  %v36 = vld [vmem:[%s1 + $0x28] sm:$0xf]
  %v37 = vld [vmem:[%s1 + $0x2c] sm:$0xf]
  %v38 = vld [vmem:[%s1 + $0x30] sm:$0xf]
  %v39 = vld [vmem:[%s1 + $0x34] sm:$0xf]
  %v40 = vld [vmem:[%s1 + $0x38] sm:$0xf]
  %v41 = vld [vmem:[%s1 + $0x3c] sm:$0xf]
  %v44 = vunpack.c.l.b16 %v24
  %v45 = vunpack.c.l.b16 %v25
  %v46 = vpack.c.b16 %v45, %v44
  %v64 = vunpack.c.l.b16 %v26
  %v65 = vunpack.c.l.b16 %v27
  %v66 = vunpack.c.l.b16 %v28
  %v67 = vunpack.c.l.b16 %v29
  %v68 = vunpack.c.l.b16 %v30
  %v69 = vunpack.c.l.b16 %v31
  %v70 = vunpack.c.l.b16 %v32
  %v71 = vunpack.c.l.b16 %v33
  %v72 = vunpack.c.l.b16 %v34
  %v73 = vunpack.c.l.b16 %v35
  %v74 = vunpack.c.l.b16 %v36
  %v75 = vunpack.c.l.b16 %v37
  %v76 = vunpack.c.l.b16 %v38
  %v77 = vunpack.c.l.b16 %v39
  %v78 = vunpack.c.l.b16 %v40
  %v79 = vunpack.c.l.b16 %v41
  %v80 = vpack.c.b16 %v65, %v64
  %v81 = vpack.c.b16 %v67, %v66
  %v82 = vpack.c.b16 %v69, %v68
  %v83 = vpack.c.b16 %v71, %v70
  %v84 = vpack.c.b16 %v73, %v72
  %v85 = vpack.c.b16 %v75, %v74
  %v86 = vpack.c.b16 %v77, %v76
  %v87 = vpack.c.b16 %v79, %v78
  %96 = vmatprep.subr.bf16.mxu0 0
  %97 = vmatpush1.bf16.msra.mxu0 %v80
  %98 = vmatprep.subr.bf16.mxu0 0
  %99 = vmatpush1.bf16.msra.mxu0 %v81
  %100 = vmatprep.subr.bf16.mxu0 0
  %101 = vmatpush1.bf16.msra.mxu0 %v82
  %102 = vmatprep.subr.bf16.mxu0 0
  %103 = vmatpush1.bf16.msra.mxu0 %v83
  %104 = vmatprep.subr.bf16.mxu0 0
  %105 = vmatpush1.bf16.msra.mxu0 %v84
  %106 = vmatprep.subr.bf16.mxu0 0
  %107 = vmatpush1.bf16.msra.mxu0 %v85
  %108 = vmatprep.subr.bf16.mxu0 0
  %109 = vmatpush1.bf16.msra.mxu0 %v86
  %110 = vmatprep.subr.bf16.mxu0 0
  %111 = vmatpush1.bf16.msra.mxu0 %v87
  %112 = vmatprep.subr.bf16.mxu0 0
  %113 = vmatpush1.bf16.msra.mxu0 0
  %114 = vmatprep.subr.bf16.mxu0 0
  %115 = vmatpush1.bf16.msra.mxu0 0
  %116 = vmatprep.subr.bf16.mxu0 0
  %117 = vmatpush1.bf16.msra.mxu0 0
  %118 = vmatprep.subr.bf16.mxu0 0
  %119 = vmatpush1.bf16.msra.mxu0 0
  %120 = vmatprep.subr.bf16.mxu0 0
  %121 = vmatpush1.bf16.msra.mxu0 0
  %122 = vmatprep.subr.bf16.mxu0 0
  %123 = vmatpush1.bf16.msra.mxu0 0
  %124 = vmatprep.subr.bf16.mxu0 0
  %125 = vmatpush1.bf16.msra.mxu0 0
  %126 = vmatprep.subr.bf16.mxu0 0
  %127 = vmatpush1.bf16.msra.mxu0 0
  %128 = vmatprep.mubr.bf16.mxu0 0
  %129 = vmatmul.mubr.bf16.gmra.mrb[0].mxu0 %v46
  %v130 = vpop.f32.mrb[0].mxu0
  %v131 = vadd.f32 0.0, %v130
  %v132 = vpop.f32.mrb[0].mxu0
  %v133 = vpop.f32.mrb[0].mxu0
  %v134 = vadd.f32 0.0, %v133
  %v135 = vpop.f32.mrb[0].mxu0
  %136 = vdwg.mxu0
  %v137 = vadd.f32 %v22, %v131
  %v138 = vadd.f32 %v23, %v134
  %vm139 = vcmask 261120
  %140 = vst.msk [vmem:[#allocation2] sm:$0xff] %vm139, %v137
  %141 = vst.msk [vmem:[#allocation2 + $0x8] sm:$0xff] %vm139, %v138
  // Predicated region
  $region18: #{generator_forward.20} parent=0 // pred_check
    %p142 = pneg %p15
  $region19: #{generator_forward.20} parent=0 // pred_check_branch
    %144 = sbr.rel (%p142) target = $region21
  $region20: #{generator_forward.20} parent=0 // pred_region
    %v145 = vld [vmem:[#allocation2] sm:$0xff]
    %v146 = vld [vmem:[#allocation2 + $0x8] sm:$0xff]
    %v147 = vld [vmem:[%s2] sm:$0x1]
    %v149 = vlaneseq
    %v150 = vshrl.u32 %v149, 7
    %v151 = vsub.s32 0, %v150
    %v152 = vrot.slane %v147, %v151
    %v154 = vadd.f32 %v145, %v152
    %v155 = vadd.f32 %v146, %v152
    %v156 = vpack.c.bf16 %v155, %v154
    %v158 = vunpack.c.l.b16 %v156
    %v159 = vunpack.c.h.b16 %v156
    %v160 = vpack.c.b16 %v158, %v158
    %v161 = vpack.c.b16 %v159, %v159
    %vm164 = vcmask 257024
    %165 = vst.msk [vmem:[%s3] sm:$0xf] %vm164, %v160
    %166 = vst.msk [vmem:[%s3 + $0x4] sm:$0xf] %vm164, %v161
  $region21: #{generator_forward.20} parent=0 // pred_fallthru
    _
  // Predicated region
  $region22: #{generator_forward.20} parent=0 // pred_check
    _
  $region23: #{generator_forward.20} parent=0 // pred_check_branch
    %168 = sbr.rel (0) target = $region25
  $region24: #{generator_forward.20} parent=0 // pred_region
    _
  $region25: #{generator_forward.20} parent=0 // pred_fallthru
    _
  // Predicated region
  $region26: #{generator_forward.20} parent=0 // pred_check
    _
  $region27: #{generator_forward.20} parent=0 // pred_check_branch
    %170 = sbr.rel (0) target = $region29
  $region28: #{generator_forward.20} parent=0 // pred_region
    _
  $region29: #{generator_forward.20} parent=0 // pred_fallthru
    _

// kernel: generator_forward.19
$region0: #{generator_forward.19}
  #allocation0 [shape = 'u32[]', space=smem, size = 0x4, offset = 0x4, fixed_abs, tag = 'smem constant byte address 0x4 - core index']
  #allocation1 [shape = 'u32[144,128]{1,0:T(1,128)}', space=vmem, size = 0x12000, scoped, tag = 'internal scratch']
  #allocation2 [shape = 'f32[16,128]{1,0:T(8,128)}', space=vmem, size = 0x2000, scoped, tag = 'scratch operand']
  %s0 = inlined_call_operand.vmem [shape: bf16[16,32], index: 0, kind: input, shape index: {}]
  %s1 = inlined_call_operand.vmem [shape: bf16[32,128], index: 1, kind: input, shape index: {}]
  %s2 = inlined_call_operand.vmem [shape: f32[1,128], index: 2, kind: input, shape index: {}]
  %s3 = inlined_call_operand.vmem [shape: bf16[16,128], index: 3, kind: output, shape index: {}]
  %s4 = sld [smem:[#allocation0]]
  $region30: #{generator_forward.19} parent=0
    _
  %s6 = ssub.s32 1, %s4
  %s7 = scalar_select 0, %s6, %s4
  // Predicated region
  $region2: #{generator_forward.19} parent=0 // pred_check
    _
  $region3: #{generator_forward.19} parent=0 // pred_check_branch
    %9 = sbr.rel (0) target = $region5
  $region4: #{generator_forward.19} parent=0 // pred_region
    _
  $region5: #{generator_forward.19} parent=0 // pred_fallthru
    _
  // Predicated region
  $region6: #{generator_forward.19} parent=0 // pred_check
    _
  $region7: #{generator_forward.19} parent=0 // pred_check_branch
    %11 = sbr.rel (0) target = $region9
  $region8: #{generator_forward.19} parent=0 // pred_region
    _
  $region9: #{generator_forward.19} parent=0 // pred_fallthru
    _
  // Predicated region
  $region10: #{generator_forward.19} parent=0 // pred_check
    _
  $region11: #{generator_forward.19} parent=0 // pred_check_branch
    %13 = sbr.rel (0) target = $region13
  $region12: #{generator_forward.19} parent=0 // pred_region
    _
  $region13: #{generator_forward.19} parent=0 // pred_fallthru
    _
  %p15 = scmp.eq.s32.totalorder 0, 0
  // Predicated region
  $region14: #{generator_forward.19} parent=0 // pred_check
    %p16 = pneg %p15
  $region15: #{generator_forward.19} parent=0 // pred_check_branch
    %18 = sbr.rel (%p16) target = $region17
  $region16: #{generator_forward.19} parent=0 // pred_region
    %19 = vst [vmem:[#allocation2] sm:$0xff] 0.0
    %20 = vst [vmem:[#allocation2 + $0x8] sm:$0xff] 0.0
  $region17: #{generator_forward.19} parent=0 // pred_fallthru
    _
  %v21 = vld [vmem:[#allocation2] sm:$0xff]
  %v22 = vld [vmem:[#allocation2 + $0x8] sm:$0xff]
  %v23 = vld [vmem:[%s0] sm:$0xf]
  %v24 = vld [vmem:[%s0 + $0x4] sm:$0xf]
  %v25 = vld [vmem:[%s1] sm:$0xf]
  %v26 = vld [vmem:[%s1 + $0x4] sm:$0xf]
  %v27 = vld [vmem:[%s1 + $0x8] sm:$0xf]
  %v28 = vld [vmem:[%s1 + $0xc] sm:$0xf]
  %v31 = vunpack.c.l.b16 %v23
  %v32 = vunpack.c.l.b16 %v24
  %v33 = vpack.c.b16 %v32, %v31
  %v38 = vunpack.c.l.b16 %v25
  %v39 = vunpack.c.l.b16 %v26
  %v40 = vunpack.c.l.b16 %v27
  %v41 = vunpack.c.l.b16 %v28
  %v42 = vpack.c.b16 %v39, %v38
  %v43 = vpack.c.b16 %v41, %v40
  %vm46 = vcmask 261120
  %v48 = vsel %vm46, %v33, 0
  %50 = vmatprep.subr.bf16.mxu0 0
  %51 = vmatpush1.bf16.msra.mxu0 %v42
  %52 = vmatprep.subr.bf16.mxu0 0
  %53 = vmatpush1.bf16.msra.mxu0 %v43
  %54 = vmatprep.subr.bf16.mxu0 0
  %55 = vmatpush1.bf16.msra.mxu0 0
  %56 = vmatprep.subr.bf16.mxu0 0
  %57 = vmatpush1.bf16.msra.mxu0 0
  %58 = vmatprep.subr.bf16.mxu0 0
  %59 = vmatpush1.bf16.msra.mxu0 0
  %60 = vmatprep.subr.bf16.mxu0 0
  %61 = vmatpush1.bf16.msra.mxu0 0
  %62 = vmatprep.subr.bf16.mxu0 0
  %63 = vmatpush1.bf16.msra.mxu0 0
  %64 = vmatprep.subr.bf16.mxu0 0
  %65 = vmatpush1.bf16.msra.mxu0 0
  %66 = vmatprep.subr.bf16.mxu0 0
  %67 = vmatpush1.bf16.msra.mxu0 0
  %68 = vmatprep.subr.bf16.mxu0 0
  %69 = vmatpush1.bf16.msra.mxu0 0
  %70 = vmatprep.subr.bf16.mxu0 0
  %71 = vmatpush1.bf16.msra.mxu0 0
  %72 = vmatprep.subr.bf16.mxu0 0
  %73 = vmatpush1.bf16.msra.mxu0 0
  %74 = vmatprep.subr.bf16.mxu0 0
  %75 = vmatpush1.bf16.msra.mxu0 0
  %76 = vmatprep.subr.bf16.mxu0 0
  %77 = vmatpush1.bf16.msra.mxu0 0
  %78 = vmatprep.subr.bf16.mxu0 0
  %79 = vmatpush1.bf16.msra.mxu0 0
  %80 = vmatprep.subr.bf16.mxu0 0
  %81 = vmatpush1.bf16.msra.mxu0 0
  %82 = vmatprep.mubr.bf16.mxu0 0
  %83 = vmatmul.mubr.bf16.gmra.mrb[0].mxu0 %v48
  %v84 = vpop.f32.mrb[0].mxu0
  %v85 = vadd.f32 0.0, %v84
  %v86 = vpop.f32.mrb[0].mxu0
  %v87 = vpop.f32.mrb[0].mxu0
  %v88 = vadd.f32 0.0, %v87
  %v89 = vpop.f32.mrb[0].mxu0
  %90 = vdwg.mxu0
  %v91 = vadd.f32 %v21, %v85
  %v92 = vadd.f32 %v22, %v88
  %93 = vst [vmem:[#allocation2] sm:$0xff] %v91
  %94 = vst [vmem:[#allocation2 + $0x8] sm:$0xff] %v92
  // Predicated region
  $region18: #{generator_forward.19} parent=0 // pred_check
    %p95 = pneg %p15
  $region19: #{generator_forward.19} parent=0 // pred_check_branch
    %97 = sbr.rel (%p95) target = $region21
  $region20: #{generator_forward.19} parent=0 // pred_region
    %v98 = vld [vmem:[#allocation2] sm:$0xff]
    %v99 = vld [vmem:[#allocation2 + $0x8] sm:$0xff]
    %v100 = vld [vmem:[%s2] sm:$0x1]
    %v102 = vlaneseq
    %v103 = vshrl.u32 %v102, 7
    %v104 = vsub.s32 0, %v103
    %v105 = vrot.slane %v100, %v104
    %v107 = vadd.f32 %v98, %v105
    %v108 = vadd.f32 %v99, %v105
    %v109 = vmax.f32 %v107, 0.0
    %v110 = vmax.f32 %v108, 0.0
    %v111 = vpack.c.bf16 %v110, %v109
    %v113 = vunpack.c.l.b16 %v111
    %v114 = vunpack.c.h.b16 %v111
    %v115 = vpack.c.b16 %v113, %v113
    %v116 = vpack.c.b16 %v114, %v114
    %119 = vst [vmem:[%s3] sm:$0xf] %v115
    %120 = vst [vmem:[%s3 + $0x4] sm:$0xf] %v116
  $region21: #{generator_forward.19} parent=0 // pred_fallthru
    _
  // Predicated region
  $region22: #{generator_forward.19} parent=0 // pred_check
    _
  $region23: #{generator_forward.19} parent=0 // pred_check_branch
    %122 = sbr.rel (0) target = $region25
  $region24: #{generator_forward.19} parent=0 // pred_region
    _
  $region25: #{generator_forward.19} parent=0 // pred_fallthru
    _
  // Predicated region
  $region26: #{generator_forward.19} parent=0 // pred_check
    _
  $region27: #{generator_forward.19} parent=0 // pred_check_branch
    %124 = sbr.rel (0) target = $region29
  $region28: #{generator_forward.19} parent=0 // pred_region
    _
  $region29: #{generator_forward.19} parent=0 // pred_fallthru
    _

</llo_original>
